<compile_context>
chip_gen: v7x
topology: tpu7x:2x2x1
jax: 0.10.0
libtpu: 0.0.40
codegen_flags: <defaults>
</compile_context>

<pallas_src>
import functools
import math

import jax
import jax.numpy as jnp
from jax.experimental import pallas as pl
from jax.experimental.pallas import tpu as pltpu

_TOP_N = 500
_PACKED_LANES = (1024, 512, 256, 128)              # rows % 8 == 0 -> packed vregs
_EXACT_LANES = (1024, 512, 256, 128, 2048, 4096)   # exact fit, rows maybe ragged
_MXU_MIN_ELEMS = 1 << 16      # offload count reductions to the MXU above this
_PAIR_MAX_ELEMS = 1 << 18     # 2-bit radix rounds while latency-bound, 1-bit above


def _select_threshold(count_ge, nbits, k, pair):
    """Greedy MSB-first radix select: max t (nbits wide) with count_ge(t) >= k.

    `count_ge(c)` must return an exact (integer-valued) f32 count; `k` is an
    f32 scalar.  With pair=True, two bits are resolved per round (3 candidate
    counts per round, half the serialized reduce->scalar chains)."""
    t = jnp.int32(0)
    b = nbits
    if pair and (nbits % 2 == 1):                  # lone top bit, then pairs
        b -= 1
        c = jnp.int32(1 << b)
        t = jnp.where(count_ge(c) >= k, c, t)
    if pair:
        for lo in range(b - 2, -1, -2):            # bit pairs (lo+1, lo)
            c1 = t | jnp.int32(1 << lo)
            c2 = t | jnp.int32(2 << lo)
            c3 = t | jnp.int32(3 << lo)
            n1 = count_ge(c1)
            n2 = count_ge(c2)
            n3 = count_ge(c3)
            t = jnp.where(n1 >= k, c1, t)
            t = jnp.where(n2 >= k, c2, t)
            t = jnp.where(n3 >= k, c3, t)
    else:
        for lo in range(b - 1, -1, -1):            # classic 1-bit-per-round
            c = t | jnp.int32(1 << lo)
            t = jnp.where(count_ge(c) >= k, c, t)
    return t


def _topk_add_kernel(w_ref, d_ref, out_ref, *, top_n, valid, idx_bits,
                     use_mxu, pair_rounds):
    """out = w + 1 at EXACTLY `top_n` positions: the largest |d| values, ties
    broken toward the earliest flattened position (torch.topk adds exactly 500)."""
    rows, lanes = d_ref.shape
    d = d_ref[...].astype(jnp.float32)             # upcast bf16/fp16 in-kernel
    # |x| clears the sign bit, so the int32 bit pattern is monotone in the value.
    bits = pltpu.bitcast(jnp.abs(d), jnp.int32)

    ridx = jax.lax.broadcasted_iota(jnp.int32, (rows, lanes), 0)
    lidx = jax.lax.broadcasted_iota(jnp.int32, (rows, lanes), 1)
    flat = ridx * lanes + lidx                     # row-major flattened position

    if valid is not None:                          # ragged tail: never selectable
        bits = jnp.where(flat < valid, bits, jnp.int32(-1))

    if use_mxu:
        # Count on the otherwise-idle MXU: mask(bf16) @ selector column.  Counts
        # stay < 2^24 so the f32 accumulation is exact.
        sel = (jax.lax.broadcasted_iota(jnp.int32, (lanes, 128), 1) == 0)
        sel = sel.astype(jnp.bfloat16)

        def count(mask):
            prod = jnp.dot(mask.astype(jnp.bfloat16), sel,
                           preferred_element_type=jnp.float32)
            return jnp.sum(prod)
    else:
        def count(mask):
            return jnp.sum(mask.astype(jnp.float32))

    kf = jnp.float32(top_n)

    # ---- stage 1: radix-select the top_n-th largest |d| bit pattern (31 value
    # bits; the sign bit is always 0 after abs).
    t = _select_threshold(lambda c: count(bits >= c), 31, kf, pair_rounds)

    # ---- stage 2: exact tie-break.  Keep everything strictly above the
    # threshold plus the earliest `top_n - n_gt` positions that equal it.  The
    # inverted flat index is distinct per element, so this selects exactly the
    # required number even for repeated values / all-zero rows.
    gt = bits > t
    eq = bits == t
    need = kf - count(gt)                          # in [1, top_n]
    inv = jnp.int32(rows * lanes - 1) - flat       # larger == earlier position
    s = _select_threshold(lambda c: count(eq & (inv >= c)), idx_bits, need,
                          pair_rounds)

    add = (gt | (eq & (inv >= s))).astype(out_ref.dtype)
    out_ref[...] = w_ref[...] + add


def _pick_factorization(m):
    """(rows, lanes, padded) with rows % 8 == 0 preferred (full vreg packing)."""
    for lanes in _PACKED_LANES:
        if m % (lanes * 8) == 0:
            return m // lanes, lanes, False
    for lanes in _EXACT_LANES:                     # exact fit, partial sublanes
        if m % lanes == 0:
            return m // lanes, lanes, False
    lanes = 128                                    # ragged: pad to packed layout
    rows = pl.cdiv(m, lanes * 8) * 8
    return rows, lanes, True


def _vmem_budget(w_bytes, d_bytes, elems, nbuf):
    # nbuf pipeline buffers for (w in, out, d) + bits/index/mask temporaries
    # (the `bits` temp is live across every unrolled radix pass) + slack.
    return nbuf * (2 * w_bytes + d_bytes) + 3 * elems * 4 + (2 << 20)


@functools.partial(jax.jit, static_argnames=("top_n",))
def topk_weight_update(weight, difference, top_n=_TOP_N):
    """weight[i] += 1 at exactly top_n positions of the largest |difference[i]|
    (flattened), independently per batch element."""
    assert weight.shape == difference.shape
    orig_shape = weight.shape
    b = orig_shape[0]
    m = math.prod(orig_shape[1:])
    top_n = int(min(top_n, m))                     # torch.topk errors if m < top_n

    rows, lanes, padded = _pick_factorization(m)
    m_pad = rows * lanes
    if padded:
        # TODO(synk): the ragged path still pads in HBM; a manual-DMA (pl.ANY)
        # variant would avoid the extra weight/difference copies entirely.
        pad = m_pad - m
        w2 = jnp.pad(weight.reshape(b, m), ((0, 0), (0, pad)))
        d2 = jnp.pad(difference.reshape(b, m), ((0, 0), (0, pad)))
        valid = m                                  # masked in-kernel (never selected)
    else:
        w2 = weight.reshape(b, m)
        d2 = difference.reshape(b, m)
        valid = None

    w3 = w2.reshape(b, rows, lanes)
    d3 = d2.reshape(b, rows, lanes)                # native dtype; upcast in-kernel

    elems = rows * lanes
    idx_bits = max((elems - 1).bit_length(), 1)
    use_mxu = elems >= _MXU_MIN_ELEMS
    pair_rounds = elems <= _PAIR_MAX_ELEMS

    w_blk = elems * w3.dtype.itemsize
    d_blk = elems * d3.dtype.itemsize
    try:
        vmem_cap = int(pltpu.get_tpu_info().vmem_capacity_bytes)
    except Exception:
        vmem_cap = 64 << 20                        # conservative (v7x) default
    cap = max(vmem_cap - (16 << 20), 32 << 20)     # headroom for internal scratch

    nbuf = 2
    if _vmem_budget(w_blk, d_blk, elems, 2) > cap:
        nbuf = 1                                   # huge rows: single-buffer (v7x)
    vmem_limit = int(min(max(_vmem_budget(w_blk, d_blk, elems, nbuf), 32 << 20), cap))
    # TODO(synk): per-batch rows that do not fit even single-buffered need a
    # chunked two-pass (per-chunk counts -> combine -> apply) path.

    blk = (None, rows, lanes)                      # batch dim squeezed in-kernel
    imap = lambda i: (i, 0, 0)
    spec_kw = {"pipeline_mode": pl.Buffered(1)} if nbuf == 1 else {}

    kernel = functools.partial(_topk_add_kernel, top_n=top_n, valid=valid,
                               idx_bits=idx_bits, use_mxu=use_mxu,
                               pair_rounds=pair_rounds)

    counts_stage1 = 16 * 3 if pair_rounds else 31
    counts_stage2 = ((idx_bits + 1) // 2) * 3 if pair_rounds else idx_bits
    flops = (3 * (counts_stage1 + counts_stage2) + 12) * b * elems

    out = pl.pallas_call(
        kernel,
        out_shape=jax.ShapeDtypeStruct((b, rows, lanes), weight.dtype),
        grid_spec=pltpu.PrefetchScalarGridSpec(
            num_scalar_prefetch=0,
            grid=(b,),
            in_specs=[pl.BlockSpec(blk, imap, **spec_kw),
                      pl.BlockSpec(blk, imap, **spec_kw)],
            out_specs=pl.BlockSpec(blk, imap, **spec_kw),
        ),
        compiler_params=pltpu.CompilerParams(
            dimension_semantics=("parallel",),
            vmem_limit_bytes=vmem_limit,
        ),
        input_output_aliases={0: 0},               # update the weights in place
        cost_estimate=pl.CostEstimate(
            flops=flops,
            transcendentals=0,
            bytes_accessed=b * elems * (2 * w3.dtype.itemsize + d3.dtype.itemsize),
        ),
    )(w3, d3)
    # TODO(synk): with grid=(b,) a batch of 1 leaves one v7x TensorCore idle; a
    # second 'parallel' row-chunk axis with a two-pass count/apply would fix that.

    out = out.reshape(b, m_pad)
    if padded:
        out = out[:, :m]
    return out.reshape(orig_shape)


# ---- module-level state mirroring `global_weight_dict_1` of the PyTorch module ----
_GLOBAL_WEIGHT_DICT_1 = {}


class MaxResidueWeight:
    """JAX/Pallas port of `Max`: per-iteration weight map; on even epochs > 1,
    add +1 at the top-500 |difference| positions of every batch element."""

    def __init__(self, weight, top_n=_TOP_N):
        self.initial_weight = jnp.asarray(weight)
        self.top_n = top_n

    def __call__(self, difference, epoch, iteration):
        global _GLOBAL_WEIGHT_DICT_1
        if epoch == 0:
            _GLOBAL_WEIGHT_DICT_1 = {}
        if iteration not in _GLOBAL_WEIGHT_DICT_1:
            if len(_GLOBAL_WEIGHT_DICT_1) == 0:
                _GLOBAL_WEIGHT_DICT_1[iteration] = self.initial_weight
            else:
                last_iteration = max(_GLOBAL_WEIGHT_DICT_1.keys())
                _GLOBAL_WEIGHT_DICT_1[iteration] = _GLOBAL_WEIGHT_DICT_1[last_iteration]
        if 1 < epoch and epoch % 2 == 0:
            _GLOBAL_WEIGHT_DICT_1[iteration] = topk_weight_update(
                _GLOBAL_WEIGHT_DICT_1[iteration], difference, top_n=self.top_n)
            return _GLOBAL_WEIGHT_DICT_1[iteration]
        return _GLOBAL_WEIGHT_DICT_1[iteration]


if __name__ == "__main__":
    key = jax.random.PRNGKey(0)
    k_w, k_d = jax.random.split(key)
    shape = (2, 4, 16, 16)                    # NCHW; per-batch elements = 1024 >= 500
    top_n = _TOP_N
    weight = jax.random.normal(k_w, shape, dtype=jnp.float32)
    difference = jax.random.normal(k_d, shape, dtype=jnp.float32)

    mod = MaxResidueWeight(weight, top_n=top_n)

    # epoch 0: dict reset, returns the initial weight untouched (no kernel)
    w0 = jax.block_until_ready(mod(difference, epoch=0, iteration=0))
    assert jnp.array_equal(w0, weight)

    # epoch 1 (odd): still no update
    w1 = jax.block_until_ready(mod(difference, epoch=1, iteration=0))
    assert jnp.array_equal(w1, weight)

    # epoch 2 (even, > 1): Pallas in-kernel radix top-k + fused +1 update
    w2 = jax.block_until_ready(mod(difference, epoch=2, iteration=0))

    # torch-style reference: scatter +1 at the top-`top_n` |difference| indices
    b = shape[0]
    m = weight.size // b
    d_flat = jnp.abs(difference.reshape(b, m))
    _, idxs = jax.lax.top_k(d_flat, top_n)
    add_ref = jnp.zeros((b, m), weight.dtype).at[jnp.arange(b)[:, None], idxs].set(1)
    ref = weight + add_ref.reshape(shape)
    assert jnp.array_equal(w2, ref), "mismatch vs top-k reference"
    added = (w2 - weight).reshape(b, m).sum(axis=1)
    assert bool(jnp.all(added == top_n)), f"expected {top_n} additions, got {added}"

    # tie / degenerate-row path: only 100 nonzero |difference| values -> the
    # remaining 400 selections must be the earliest zero positions, 500 total.
    d_tie = jnp.zeros((b, m), jnp.float32)
    d_tie = d_tie.at[:, :100].set(jnp.arange(1, 101, dtype=jnp.float32))
    w_tie = jax.block_until_ready(
        topk_weight_update(jnp.zeros(shape, jnp.float32),
                           d_tie.reshape(shape), top_n=top_n))
    expect_tie = (jnp.arange(m) < top_n).astype(jnp.float32)
    expect_tie = jnp.broadcast_to(expect_tie, (b, m)).reshape(shape)
    assert jnp.array_equal(w_tie, expect_tie), "tie-break path mismatch"
    assert bool(jnp.all(w_tie.reshape(b, m).sum(axis=1) == top_n))

    print("KERNEL_OK")
</pallas_src>

<mosaic_0001>
module attributes {stable_mosaic.version = 11 : i64} {
  func.func @_topk_add_kernel(%arg0: i32, %arg1: memref<1x8x128xf32, #tpu.memory_space<vmem>>, %arg2: memref<1x8x128xf32, #tpu.memory_space<vmem>>, %arg3: memref<1x8x128xf32, #tpu.memory_space<vmem>>) attributes {dimension_semantics = [#tpu.dimension_semantics<parallel>], iteration_bounds = array<i64: 2>, scalar_prefetch = 0 : i64, scratch_operands = 0 : i64, tpu.core_type = #tpu.core_type<tc>, window_params = [{transform_indices = @transform_0, window_bounds = array<i64: 1, 8, 128>}, {transform_indices = @transform_1, window_bounds = array<i64: 1, 8, 128>}, {transform_indices = @transform_2, window_bounds = array<i64: 1, 8, 128>}]} {
    %c0 = arith.constant 0 : index
    %c0_0 = arith.constant 0 : index
    %c0_1 = arith.constant 0 : index
    %0 = vector.load %arg2[%c0, %c0_0, %c0_1] : memref<1x8x128xf32, #tpu.memory_space<vmem>>, vector<1x8x128xf32>
    %1 = vector.shape_cast %0 : vector<1x8x128xf32> to vector<8x128xf32>
    %2 = math.absf %1 : vector<8x128xf32>
    %3 = tpu.bitcast %2 : vector<8x128xf32> -> vector<8x128xi32>
    %4 = tpu.iota {dimensions = array<i32: 0>} : vector<8x128xi32>
    %5 = tpu.iota {dimensions = array<i32: 1>} : vector<8x128xi32>
    %c128_i32 = arith.constant 128 : i32
    %6 = vector.broadcast %c128_i32 : i32 to vector<8x128xi32>
    %7 = arith.muli %4, %6 : vector<8x128xi32>
    %8 = arith.addi %7, %5 : vector<8x128xi32>
    %c1073741824_i32 = arith.constant 1073741824 : i32
    %9 = vector.broadcast %c1073741824_i32 : i32 to vector<8x128xi32>
    %10 = arith.cmpi sge, %3, %9 : vector<8x128xi32>
    %11 = arith.extui %10 : vector<8x128xi1> to vector<8x128xi32>
    %12 = arith.sitofp %11 : vector<8x128xi32> to vector<8x128xf32>
    %13 = vector.shape_cast %12 : vector<8x128xf32> to vector<1x8x128xf32>
    %cst = arith.constant dense<0.000000e+00> : vector<1xf32>
    %14 = vector.multi_reduction <add>, %13, %cst [1, 2] : vector<1x8x128xf32> to vector<1xf32>
    %15 = vector.shape_cast %14 : vector<1xf32> to vector<1x1x1xf32>
    %16 = vector.extract %15[0, 0, 0] : f32 from vector<1x1x1xf32>
    %cst_2 = arith.constant 5.000000e+02 : f32
    %17 = arith.cmpf oge, %16, %cst_2 : f32
    %c1073741824_i32_3 = arith.constant 1073741824 : i32
    %c0_i32 = arith.constant 0 : i32
    %18 = arith.select %17, %c1073741824_i32_3, %c0_i32 : i32
    %c268435456_i32 = arith.constant 268435456 : i32
    %19 = arith.ori %18, %c268435456_i32 : i32
    %c536870912_i32 = arith.constant 536870912 : i32
    %20 = arith.ori %18, %c536870912_i32 : i32
    %c805306368_i32 = arith.constant 805306368 : i32
    %21 = arith.ori %18, %c805306368_i32 : i32
    %22 = vector.broadcast %19 : i32 to vector<8x128xi32>
    %23 = arith.cmpi sge, %3, %22 : vector<8x128xi32>
    %24 = arith.extui %23 : vector<8x128xi1> to vector<8x128xi32>
    %25 = arith.sitofp %24 : vector<8x128xi32> to vector<8x128xf32>
    %26 = vector.shape_cast %25 : vector<8x128xf32> to vector<1x8x128xf32>
    %cst_4 = arith.constant dense<0.000000e+00> : vector<1xf32>
    %27 = vector.multi_reduction <add>, %26, %cst_4 [1, 2] : vector<1x8x128xf32> to vector<1xf32>
    %28 = vector.shape_cast %27 : vector<1xf32> to vector<1x1x1xf32>
    %29 = vector.extract %28[0, 0, 0] : f32 from vector<1x1x1xf32>
    %30 = vector.broadcast %20 : i32 to vector<8x128xi32>
    %31 = arith.cmpi sge, %3, %30 : vector<8x128xi32>
    %32 = arith.extui %31 : vector<8x128xi1> to vector<8x128xi32>
    %33 = arith.sitofp %32 : vector<8x128xi32> to vector<8x128xf32>
    %34 = vector.shape_cast %33 : vector<8x128xf32> to vector<1x8x128xf32>
    %cst_5 = arith.constant dense<0.000000e+00> : vector<1xf32>
    %35 = vector.multi_reduction <add>, %34, %cst_5 [1, 2] : vector<1x8x128xf32> to vector<1xf32>
    %36 = vector.shape_cast %35 : vector<1xf32> to vector<1x1x1xf32>
    %37 = vector.extract %36[0, 0, 0] : f32 from vector<1x1x1xf32>
    %38 = vector.broadcast %21 : i32 to vector<8x128xi32>
    %39 = arith.cmpi sge, %3, %38 : vector<8x128xi32>
    %40 = arith.extui %39 : vector<8x128xi1> to vector<8x128xi32>
    %41 = arith.sitofp %40 : vector<8x128xi32> to vector<8x128xf32>
    %42 = vector.shape_cast %41 : vector<8x128xf32> to vector<1x8x128xf32>
    %cst_6 = arith.constant dense<0.000000e+00> : vector<1xf32>
    %43 = vector.multi_reduction <add>, %42, %cst_6 [1, 2] : vector<1x8x128xf32> to vector<1xf32>
    %44 = vector.shape_cast %43 : vector<1xf32> to vector<1x1x1xf32>
    %45 = vector.extract %44[0, 0, 0] : f32 from vector<1x1x1xf32>
    %cst_7 = arith.constant 5.000000e+02 : f32
    %46 = arith.cmpf oge, %29, %cst_7 : f32
    %47 = arith.select %46, %19, %18 : i32
    %cst_8 = arith.constant 5.000000e+02 : f32
    %48 = arith.cmpf oge, %37, %cst_8 : f32
    %49 = arith.select %48, %20, %47 : i32
    %cst_9 = arith.constant 5.000000e+02 : f32
    %50 = arith.cmpf oge, %45, %cst_9 : f32
    %51 = arith.select %50, %21, %49 : i32
    %c67108864_i32 = arith.constant 67108864 : i32
    %52 = arith.ori %51, %c67108864_i32 : i32
    %c134217728_i32 = arith.constant 134217728 : i32
    %53 = arith.ori %51, %c134217728_i32 : i32
    %c201326592_i32 = arith.constant 201326592 : i32
    %54 = arith.ori %51, %c201326592_i32 : i32
    %55 = vector.broadcast %52 : i32 to vector<8x128xi32>
    %56 = arith.cmpi sge, %3, %55 : vector<8x128xi32>
    %57 = arith.extui %56 : vector<8x128xi1> to vector<8x128xi32>
    %58 = arith.sitofp %57 : vector<8x128xi32> to vector<8x128xf32>
    %59 = vector.shape_cast %58 : vector<8x128xf32> to vector<1x8x128xf32>
    %cst_10 = arith.constant dense<0.000000e+00> : vector<1xf32>
    %60 = vector.multi_reduction <add>, %59, %cst_10 [1, 2] : vector<1x8x128xf32> to vector<1xf32>
    %61 = vector.shape_cast %60 : vector<1xf32> to vector<1x1x1xf32>
    %62 = vector.extract %61[0, 0, 0] : f32 from vector<1x1x1xf32>
    %63 = vector.broadcast %53 : i32 to vector<8x128xi32>
    %64 = arith.cmpi sge, %3, %63 : vector<8x128xi32>
    %65 = arith.extui %64 : vector<8x128xi1> to vector<8x128xi32>
    %66 = arith.sitofp %65 : vector<8x128xi32> to vector<8x128xf32>
    %67 = vector.shape_cast %66 : vector<8x128xf32> to vector<1x8x128xf32>
    %cst_11 = arith.constant dense<0.000000e+00> : vector<1xf32>
    %68 = vector.multi_reduction <add>, %67, %cst_11 [1, 2] : vector<1x8x128xf32> to vector<1xf32>
    %69 = vector.shape_cast %68 : vector<1xf32> to vector<1x1x1xf32>
    %70 = vector.extract %69[0, 0, 0] : f32 from vector<1x1x1xf32>
    %71 = vector.broadcast %54 : i32 to vector<8x128xi32>
    %72 = arith.cmpi sge, %3, %71 : vector<8x128xi32>
    %73 = arith.extui %72 : vector<8x128xi1> to vector<8x128xi32>
    %74 = arith.sitofp %73 : vector<8x128xi32> to vector<8x128xf32>
    %75 = vector.shape_cast %74 : vector<8x128xf32> to vector<1x8x128xf32>
    %cst_12 = arith.constant dense<0.000000e+00> : vector<1xf32>
    %76 = vector.multi_reduction <add>, %75, %cst_12 [1, 2] : vector<1x8x128xf32> to vector<1xf32>
    %77 = vector.shape_cast %76 : vector<1xf32> to vector<1x1x1xf32>
    %78 = vector.extract %77[0, 0, 0] : f32 from vector<1x1x1xf32>
    %cst_13 = arith.constant 5.000000e+02 : f32
    %79 = arith.cmpf oge, %62, %cst_13 : f32
    %80 = arith.select %79, %52, %51 : i32
    %cst_14 = arith.constant 5.000000e+02 : f32
    %81 = arith.cmpf oge, %70, %cst_14 : f32
    %82 = arith.select %81, %53, %80 : i32
    %cst_15 = arith.constant 5.000000e+02 : f32
    %83 = arith.cmpf oge, %78, %cst_15 : f32
    %84 = arith.select %83, %54, %82 : i32
    %c16777216_i32 = arith.constant 16777216 : i32
    %85 = arith.ori %84, %c16777216_i32 : i32
    %c33554432_i32 = arith.constant 33554432 : i32
    %86 = arith.ori %84, %c33554432_i32 : i32
    %c50331648_i32 = arith.constant 50331648 : i32
    %87 = arith.ori %84, %c50331648_i32 : i32
    %88 = vector.broadcast %85 : i32 to vector<8x128xi32>
    %89 = arith.cmpi sge, %3, %88 : vector<8x128xi32>
    %90 = arith.extui %89 : vector<8x128xi1> to vector<8x128xi32>
    %91 = arith.sitofp %90 : vector<8x128xi32> to vector<8x128xf32>
    %92 = vector.shape_cast %91 : vector<8x128xf32> to vector<1x8x128xf32>
    %cst_16 = arith.constant dense<0.000000e+00> : vector<1xf32>
    %93 = vector.multi_reduction <add>, %92, %cst_16 [1, 2] : vector<1x8x128xf32> to vector<1xf32>
    %94 = vector.shape_cast %93 : vector<1xf32> to vector<1x1x1xf32>
    %95 = vector.extract %94[0, 0, 0] : f32 from vector<1x1x1xf32>
    %96 = vector.broadcast %86 : i32 to vector<8x128xi32>
    %97 = arith.cmpi sge, %3, %96 : vector<8x128xi32>
    %98 = arith.extui %97 : vector<8x128xi1> to vector<8x128xi32>
    %99 = arith.sitofp %98 : vector<8x128xi32> to vector<8x128xf32>
    %100 = vector.shape_cast %99 : vector<8x128xf32> to vector<1x8x128xf32>
    %cst_17 = arith.constant dense<0.000000e+00> : vector<1xf32>
    %101 = vector.multi_reduction <add>, %100, %cst_17 [1, 2] : vector<1x8x128xf32> to vector<1xf32>
    %102 = vector.shape_cast %101 : vector<1xf32> to vector<1x1x1xf32>
    %103 = vector.extract %102[0, 0, 0] : f32 from vector<1x1x1xf32>
    %104 = vector.broadcast %87 : i32 to vector<8x128xi32>
    %105 = arith.cmpi sge, %3, %104 : vector<8x128xi32>
    %106 = arith.extui %105 : vector<8x128xi1> to vector<8x128xi32>
    %107 = arith.sitofp %106 : vector<8x128xi32> to vector<8x128xf32>
    %108 = vector.shape_cast %107 : vector<8x128xf32> to vector<1x8x128xf32>
    %cst_18 = arith.constant dense<0.000000e+00> : vector<1xf32>
    %109 = vector.multi_reduction <add>, %108, %cst_18 [1, 2] : vector<1x8x128xf32> to vector<1xf32>
    %110 = vector.shape_cast %109 : vector<1xf32> to vector<1x1x1xf32>
    %111 = vector.extract %110[0, 0, 0] : f32 from vector<1x1x1xf32>
    %cst_19 = arith.constant 5.000000e+02 : f32
    %112 = arith.cmpf oge, %95, %cst_19 : f32
    %113 = arith.select %112, %85, %84 : i32
    %cst_20 = arith.constant 5.000000e+02 : f32
    %114 = arith.cmpf oge, %103, %cst_20 : f32
    %115 = arith.select %114, %86, %113 : i32
    %cst_21 = arith.constant 5.000000e+02 : f32
    %116 = arith.cmpf oge, %111, %cst_21 : f32
    %117 = arith.select %116, %87, %115 : i32
    %c4194304_i32 = arith.constant 4194304 : i32
    %118 = arith.ori %117, %c4194304_i32 : i32
    %c8388608_i32 = arith.constant 8388608 : i32
    %119 = arith.ori %117, %c8388608_i32 : i32
    %c12582912_i32 = arith.constant 12582912 : i32
    %120 = arith.ori %117, %c12582912_i32 : i32
    %121 = vector.broadcast %118 : i32 to vector<8x128xi32>
    %122 = arith.cmpi sge, %3, %121 : vector<8x128xi32>
    %123 = arith.extui %122 : vector<8x128xi1> to vector<8x128xi32>
    %124 = arith.sitofp %123 : vector<8x128xi32> to vector<8x128xf32>
    %125 = vector.shape_cast %124 : vector<8x128xf32> to vector<1x8x128xf32>
    %cst_22 = arith.constant dense<0.000000e+00> : vector<1xf32>
    %126 = vector.multi_reduction <add>, %125, %cst_22 [1, 2] : vector<1x8x128xf32> to vector<1xf32>
    %127 = vector.shape_cast %126 : vector<1xf32> to vector<1x1x1xf32>
    %128 = vector.extract %127[0, 0, 0] : f32 from vector<1x1x1xf32>
    %129 = vector.broadcast %119 : i32 to vector<8x128xi32>
    %130 = arith.cmpi sge, %3, %129 : vector<8x128xi32>
    %131 = arith.extui %130 : vector<8x128xi1> to vector<8x128xi32>
    %132 = arith.sitofp %131 : vector<8x128xi32> to vector<8x128xf32>
    %133 = vector.shape_cast %132 : vector<8x128xf32> to vector<1x8x128xf32>
    %cst_23 = arith.constant dense<0.000000e+00> : vector<1xf32>
    %134 = vector.multi_reduction <add>, %133, %cst_23 [1, 2] : vector<1x8x128xf32> to vector<1xf32>
    %135 = vector.shape_cast %134 : vector<1xf32> to vector<1x1x1xf32>
    %136 = vector.extract %135[0, 0, 0] : f32 from vector<1x1x1xf32>
    %137 = vector.broadcast %120 : i32 to vector<8x128xi32>
    %138 = arith.cmpi sge, %3, %137 : vector<8x128xi32>
    %139 = arith.extui %138 : vector<8x128xi1> to vector<8x128xi32>
    %140 = arith.sitofp %139 : vector<8x128xi32> to vector<8x128xf32>
    %141 = vector.shape_cast %140 : vector<8x128xf32> to vector<1x8x128xf32>
    %cst_24 = arith.constant dense<0.000000e+00> : vector<1xf32>
    %142 = vector.multi_reduction <add>, %141, %cst_24 [1, 2] : vector<1x8x128xf32> to vector<1xf32>
    %143 = vector.shape_cast %142 : vector<1xf32> to vector<1x1x1xf32>
    %144 = vector.extract %143[0, 0, 0] : f32 from vector<1x1x1xf32>
    %cst_25 = arith.constant 5.000000e+02 : f32
    %145 = arith.cmpf oge, %128, %cst_25 : f32
    %146 = arith.select %145, %118, %117 : i32
    %cst_26 = arith.constant 5.000000e+02 : f32
    %147 = arith.cmpf oge, %136, %cst_26 : f32
    %148 = arith.select %147, %119, %146 : i32
    %cst_27 = arith.constant 5.000000e+02 : f32
    %149 = arith.cmpf oge, %144, %cst_27 : f32
    %150 = arith.select %149, %120, %148 : i32
    %c1048576_i32 = arith.constant 1048576 : i32
    %151 = arith.ori %150, %c1048576_i32 : i32
    %c2097152_i32 = arith.constant 2097152 : i32
    %152 = arith.ori %150, %c2097152_i32 : i32
    %c3145728_i32 = arith.constant 3145728 : i32
    %153 = arith.ori %150, %c3145728_i32 : i32
    %154 = vector.broadcast %151 : i32 to vector<8x128xi32>
    %155 = arith.cmpi sge, %3, %154 : vector<8x128xi32>
    %156 = arith.extui %155 : vector<8x128xi1> to vector<8x128xi32>
    %157 = arith.sitofp %156 : vector<8x128xi32> to vector<8x128xf32>
    %158 = vector.shape_cast %157 : vector<8x128xf32> to vector<1x8x128xf32>
    %cst_28 = arith.constant dense<0.000000e+00> : vector<1xf32>
    %159 = vector.multi_reduction <add>, %158, %cst_28 [1, 2] : vector<1x8x128xf32> to vector<1xf32>
    %160 = vector.shape_cast %159 : vector<1xf32> to vector<1x1x1xf32>
    %161 = vector.extract %160[0, 0, 0] : f32 from vector<1x1x1xf32>
    %162 = vector.broadcast %152 : i32 to vector<8x128xi32>
    %163 = arith.cmpi sge, %3, %162 : vector<8x128xi32>
    %164 = arith.extui %163 : vector<8x128xi1> to vector<8x128xi32>
    %165 = arith.sitofp %164 : vector<8x128xi32> to vector<8x128xf32>
    %166 = vector.shape_cast %165 : vector<8x128xf32> to vector<1x8x128xf32>
    %cst_29 = arith.constant dense<0.000000e+00> : vector<1xf32>
    %167 = vector.multi_reduction <add>, %166, %cst_29 [1, 2] : vector<1x8x128xf32> to vector<1xf32>
    %168 = vector.shape_cast %167 : vector<1xf32> to vector<1x1x1xf32>
    %169 = vector.extract %168[0, 0, 0] : f32 from vector<1x1x1xf32>
    %170 = vector.broadcast %153 : i32 to vector<8x128xi32>
    %171 = arith.cmpi sge, %3, %170 : vector<8x128xi32>
    %172 = arith.extui %171 : vector<8x128xi1> to vector<8x128xi32>
    %173 = arith.sitofp %172 : vector<8x128xi32> to vector<8x128xf32>
    %174 = vector.shape_cast %173 : vector<8x128xf32> to vector<1x8x128xf32>
    %cst_30 = arith.constant dense<0.000000e+00> : vector<1xf32>
    %175 = vector.multi_reduction <add>, %174, %cst_30 [1, 2] : vector<1x8x128xf32> to vector<1xf32>
    %176 = vector.shape_cast %175 : vector<1xf32> to vector<1x1x1xf32>
    %177 = vector.extract %176[0, 0, 0] : f32 from vector<1x1x1xf32>
    %cst_31 = arith.constant 5.000000e+02 : f32
    %178 = arith.cmpf oge, %161, %cst_31 : f32
    %179 = arith.select %178, %151, %150 : i32
    %cst_32 = arith.constant 5.000000e+02 : f32
    %180 = arith.cmpf oge, %169, %cst_32 : f32
    %181 = arith.select %180, %152, %179 : i32
    %cst_33 = arith.constant 5.000000e+02 : f32
    %182 = arith.cmpf oge, %177, %cst_33 : f32
    %183 = arith.select %182, %153, %181 : i32
    %c262144_i32 = arith.constant 262144 : i32
    %184 = arith.ori %183, %c262144_i32 : i32
    %c524288_i32 = arith.constant 524288 : i32
    %185 = arith.ori %183, %c524288_i32 : i32
    %c786432_i32 = arith.constant 786432 : i32
    %186 = arith.ori %183, %c786432_i32 : i32
    %187 = vector.broadcast %184 : i32 to vector<8x128xi32>
    %188 = arith.cmpi sge, %3, %187 : vector<8x128xi32>
    %189 = arith.extui %188 : vector<8x128xi1> to vector<8x128xi32>
    %190 = arith.sitofp %189 : vector<8x128xi32> to vector<8x128xf32>
    %191 = vector.shape_cast %190 : vector<8x128xf32> to vector<1x8x128xf32>
    %cst_34 = arith.constant dense<0.000000e+00> : vector<1xf32>
    %192 = vector.multi_reduction <add>, %191, %cst_34 [1, 2] : vector<1x8x128xf32> to vector<1xf32>
    %193 = vector.shape_cast %192 : vector<1xf32> to vector<1x1x1xf32>
    %194 = vector.extract %193[0, 0, 0] : f32 from vector<1x1x1xf32>
    %195 = vector.broadcast %185 : i32 to vector<8x128xi32>
    %196 = arith.cmpi sge, %3, %195 : vector<8x128xi32>
    %197 = arith.extui %196 : vector<8x128xi1> to vector<8x128xi32>
    %198 = arith.sitofp %197 : vector<8x128xi32> to vector<8x128xf32>
    %199 = vector.shape_cast %198 : vector<8x128xf32> to vector<1x8x128xf32>
    %cst_35 = arith.constant dense<0.000000e+00> : vector<1xf32>
    %200 = vector.multi_reduction <add>, %199, %cst_35 [1, 2] : vector<1x8x128xf32> to vector<1xf32>
    %201 = vector.shape_cast %200 : vector<1xf32> to vector<1x1x1xf32>
    %202 = vector.extract %201[0, 0, 0] : f32 from vector<1x1x1xf32>
    %203 = vector.broadcast %186 : i32 to vector<8x128xi32>
    %204 = arith.cmpi sge, %3, %203 : vector<8x128xi32>
    %205 = arith.extui %204 : vector<8x128xi1> to vector<8x128xi32>
    %206 = arith.sitofp %205 : vector<8x128xi32> to vector<8x128xf32>
    %207 = vector.shape_cast %206 : vector<8x128xf32> to vector<1x8x128xf32>
    %cst_36 = arith.constant dense<0.000000e+00> : vector<1xf32>
    %208 = vector.multi_reduction <add>, %207, %cst_36 [1, 2] : vector<1x8x128xf32> to vector<1xf32>
    %209 = vector.shape_cast %208 : vector<1xf32> to vector<1x1x1xf32>
    %210 = vector.extract %209[0, 0, 0] : f32 from vector<1x1x1xf32>
    %cst_37 = arith.constant 5.000000e+02 : f32
    %211 = arith.cmpf oge, %194, %cst_37 : f32
    %212 = arith.select %211, %184, %183 : i32
    %cst_38 = arith.constant 5.000000e+02 : f32
    %213 = arith.cmpf oge, %202, %cst_38 : f32
    %214 = arith.select %213, %185, %212 : i32
    %cst_39 = arith.constant 5.000000e+02 : f32
    %215 = arith.cmpf oge, %210, %cst_39 : f32
    %216 = arith.select %215, %186, %214 : i32
    %c65536_i32 = arith.constant 65536 : i32
    %217 = arith.ori %216, %c65536_i32 : i32
    %c131072_i32 = arith.constant 131072 : i32
    %218 = arith.ori %216, %c131072_i32 : i32
    %c196608_i32 = arith.constant 196608 : i32
    %219 = arith.ori %216, %c196608_i32 : i32
    %220 = vector.broadcast %217 : i32 to vector<8x128xi32>
    %221 = arith.cmpi sge, %3, %220 : vector<8x128xi32>
    %222 = arith.extui %221 : vector<8x128xi1> to vector<8x128xi32>
    %223 = arith.sitofp %222 : vector<8x128xi32> to vector<8x128xf32>
    %224 = vector.shape_cast %223 : vector<8x128xf32> to vector<1x8x128xf32>
    %cst_40 = arith.constant dense<0.000000e+00> : vector<1xf32>
    %225 = vector.multi_reduction <add>, %224, %cst_40 [1, 2] : vector<1x8x128xf32> to vector<1xf32>
    %226 = vector.shape_cast %225 : vector<1xf32> to vector<1x1x1xf32>
    %227 = vector.extract %226[0, 0, 0] : f32 from vector<1x1x1xf32>
    %228 = vector.broadcast %218 : i32 to vector<8x128xi32>
    %229 = arith.cmpi sge, %3, %228 : vector<8x128xi32>
    %230 = arith.extui %229 : vector<8x128xi1> to vector<8x128xi32>
    %231 = arith.sitofp %230 : vector<8x128xi32> to vector<8x128xf32>
    %232 = vector.shape_cast %231 : vector<8x128xf32> to vector<1x8x128xf32>
    %cst_41 = arith.constant dense<0.000000e+00> : vector<1xf32>
    %233 = vector.multi_reduction <add>, %232, %cst_41 [1, 2] : vector<1x8x128xf32> to vector<1xf32>
    %234 = vector.shape_cast %233 : vector<1xf32> to vector<1x1x1xf32>
    %235 = vector.extract %234[0, 0, 0] : f32 from vector<1x1x1xf32>
    %236 = vector.broadcast %219 : i32 to vector<8x128xi32>
    %237 = arith.cmpi sge, %3, %236 : vector<8x128xi32>
    %238 = arith.extui %237 : vector<8x128xi1> to vector<8x128xi32>
    %239 = arith.sitofp %238 : vector<8x128xi32> to vector<8x128xf32>
    %240 = vector.shape_cast %239 : vector<8x128xf32> to vector<1x8x128xf32>
    %cst_42 = arith.constant dense<0.000000e+00> : vector<1xf32>
    %241 = vector.multi_reduction <add>, %240, %cst_42 [1, 2] : vector<1x8x128xf32> to vector<1xf32>
    %242 = vector.shape_cast %241 : vector<1xf32> to vector<1x1x1xf32>
    %243 = vector.extract %242[0, 0, 0] : f32 from vector<1x1x1xf32>
    %cst_43 = arith.constant 5.000000e+02 : f32
    %244 = arith.cmpf oge, %227, %cst_43 : f32
    %245 = arith.select %244, %217, %216 : i32
    %cst_44 = arith.constant 5.000000e+02 : f32
    %246 = arith.cmpf oge, %235, %cst_44 : f32
    %247 = arith.select %246, %218, %245 : i32
    %cst_45 = arith.constant 5.000000e+02 : f32
    %248 = arith.cmpf oge, %243, %cst_45 : f32
    %249 = arith.select %248, %219, %247 : i32
    %c16384_i32 = arith.constant 16384 : i32
    %250 = arith.ori %249, %c16384_i32 : i32
    %c32768_i32 = arith.constant 32768 : i32
    %251 = arith.ori %249, %c32768_i32 : i32
    %c49152_i32 = arith.constant 49152 : i32
    %252 = arith.ori %249, %c49152_i32 : i32
    %253 = vector.broadcast %250 : i32 to vector<8x128xi32>
    %254 = arith.cmpi sge, %3, %253 : vector<8x128xi32>
    %255 = arith.extui %254 : vector<8x128xi1> to vector<8x128xi32>
    %256 = arith.sitofp %255 : vector<8x128xi32> to vector<8x128xf32>
    %257 = vector.shape_cast %256 : vector<8x128xf32> to vector<1x8x128xf32>
    %cst_46 = arith.constant dense<0.000000e+00> : vector<1xf32>
    %258 = vector.multi_reduction <add>, %257, %cst_46 [1, 2] : vector<1x8x128xf32> to vector<1xf32>
    %259 = vector.shape_cast %258 : vector<1xf32> to vector<1x1x1xf32>
    %260 = vector.extract %259[0, 0, 0] : f32 from vector<1x1x1xf32>
    %261 = vector.broadcast %251 : i32 to vector<8x128xi32>
    %262 = arith.cmpi sge, %3, %261 : vector<8x128xi32>
    %263 = arith.extui %262 : vector<8x128xi1> to vector<8x128xi32>
    %264 = arith.sitofp %263 : vector<8x128xi32> to vector<8x128xf32>
    %265 = vector.shape_cast %264 : vector<8x128xf32> to vector<1x8x128xf32>
    %cst_47 = arith.constant dense<0.000000e+00> : vector<1xf32>
    %266 = vector.multi_reduction <add>, %265, %cst_47 [1, 2] : vector<1x8x128xf32> to vector<1xf32>
    %267 = vector.shape_cast %266 : vector<1xf32> to vector<1x1x1xf32>
    %268 = vector.extract %267[0, 0, 0] : f32 from vector<1x1x1xf32>
    %269 = vector.broadcast %252 : i32 to vector<8x128xi32>
    %270 = arith.cmpi sge, %3, %269 : vector<8x128xi32>
    %271 = arith.extui %270 : vector<8x128xi1> to vector<8x128xi32>
    %272 = arith.sitofp %271 : vector<8x128xi32> to vector<8x128xf32>
    %273 = vector.shape_cast %272 : vector<8x128xf32> to vector<1x8x128xf32>
    %cst_48 = arith.constant dense<0.000000e+00> : vector<1xf32>
    %274 = vector.multi_reduction <add>, %273, %cst_48 [1, 2] : vector<1x8x128xf32> to vector<1xf32>
    %275 = vector.shape_cast %274 : vector<1xf32> to vector<1x1x1xf32>
    %276 = vector.extract %275[0, 0, 0] : f32 from vector<1x1x1xf32>
    %cst_49 = arith.constant 5.000000e+02 : f32
    %277 = arith.cmpf oge, %260, %cst_49 : f32
    %278 = arith.select %277, %250, %249 : i32
    %cst_50 = arith.constant 5.000000e+02 : f32
    %279 = arith.cmpf oge, %268, %cst_50 : f32
    %280 = arith.select %279, %251, %278 : i32
    %cst_51 = arith.constant 5.000000e+02 : f32
    %281 = arith.cmpf oge, %276, %cst_51 : f32
    %282 = arith.select %281, %252, %280 : i32
    %c4096_i32 = arith.constant 4096 : i32
    %283 = arith.ori %282, %c4096_i32 : i32
    %c8192_i32 = arith.constant 8192 : i32
    %284 = arith.ori %282, %c8192_i32 : i32
    %c12288_i32 = arith.constant 12288 : i32
    %285 = arith.ori %282, %c12288_i32 : i32
    %286 = vector.broadcast %283 : i32 to vector<8x128xi32>
    %287 = arith.cmpi sge, %3, %286 : vector<8x128xi32>
    %288 = arith.extui %287 : vector<8x128xi1> to vector<8x128xi32>
    %289 = arith.sitofp %288 : vector<8x128xi32> to vector<8x128xf32>
    %290 = vector.shape_cast %289 : vector<8x128xf32> to vector<1x8x128xf32>
    %cst_52 = arith.constant dense<0.000000e+00> : vector<1xf32>
    %291 = vector.multi_reduction <add>, %290, %cst_52 [1, 2] : vector<1x8x128xf32> to vector<1xf32>
    %292 = vector.shape_cast %291 : vector<1xf32> to vector<1x1x1xf32>
    %293 = vector.extract %292[0, 0, 0] : f32 from vector<1x1x1xf32>
    %294 = vector.broadcast %284 : i32 to vector<8x128xi32>
    %295 = arith.cmpi sge, %3, %294 : vector<8x128xi32>
    %296 = arith.extui %295 : vector<8x128xi1> to vector<8x128xi32>
    %297 = arith.sitofp %296 : vector<8x128xi32> to vector<8x128xf32>
    %298 = vector.shape_cast %297 : vector<8x128xf32> to vector<1x8x128xf32>
    %cst_53 = arith.constant dense<0.000000e+00> : vector<1xf32>
    %299 = vector.multi_reduction <add>, %298, %cst_53 [1, 2] : vector<1x8x128xf32> to vector<1xf32>
    %300 = vector.shape_cast %299 : vector<1xf32> to vector<1x1x1xf32>
    %301 = vector.extract %300[0, 0, 0] : f32 from vector<1x1x1xf32>
    %302 = vector.broadcast %285 : i32 to vector<8x128xi32>
    %303 = arith.cmpi sge, %3, %302 : vector<8x128xi32>
    %304 = arith.extui %303 : vector<8x128xi1> to vector<8x128xi32>
    %305 = arith.sitofp %304 : vector<8x128xi32> to vector<8x128xf32>
    %306 = vector.shape_cast %305 : vector<8x128xf32> to vector<1x8x128xf32>
    %cst_54 = arith.constant dense<0.000000e+00> : vector<1xf32>
    %307 = vector.multi_reduction <add>, %306, %cst_54 [1, 2] : vector<1x8x128xf32> to vector<1xf32>
    %308 = vector.shape_cast %307 : vector<1xf32> to vector<1x1x1xf32>
    %309 = vector.extract %308[0, 0, 0] : f32 from vector<1x1x1xf32>
    %cst_55 = arith.constant 5.000000e+02 : f32
    %310 = arith.cmpf oge, %293, %cst_55 : f32
    %311 = arith.select %310, %283, %282 : i32
    %cst_56 = arith.constant 5.000000e+02 : f32
    %312 = arith.cmpf oge, %301, %cst_56 : f32
    %313 = arith.select %312, %284, %311 : i32
    %cst_57 = arith.constant 5.000000e+02 : f32
    %314 = arith.cmpf oge, %309, %cst_57 : f32
    %315 = arith.select %314, %285, %313 : i32
    %c1024_i32 = arith.constant 1024 : i32
    %316 = arith.ori %315, %c1024_i32 : i32
    %c2048_i32 = arith.constant 2048 : i32
    %317 = arith.ori %315, %c2048_i32 : i32
    %c3072_i32 = arith.constant 3072 : i32
    %318 = arith.ori %315, %c3072_i32 : i32
    %319 = vector.broadcast %316 : i32 to vector<8x128xi32>
    %320 = arith.cmpi sge, %3, %319 : vector<8x128xi32>
    %321 = arith.extui %320 : vector<8x128xi1> to vector<8x128xi32>
    %322 = arith.sitofp %321 : vector<8x128xi32> to vector<8x128xf32>
    %323 = vector.shape_cast %322 : vector<8x128xf32> to vector<1x8x128xf32>
    %cst_58 = arith.constant dense<0.000000e+00> : vector<1xf32>
    %324 = vector.multi_reduction <add>, %323, %cst_58 [1, 2] : vector<1x8x128xf32> to vector<1xf32>
    %325 = vector.shape_cast %324 : vector<1xf32> to vector<1x1x1xf32>
    %326 = vector.extract %325[0, 0, 0] : f32 from vector<1x1x1xf32>
    %327 = vector.broadcast %317 : i32 to vector<8x128xi32>
    %328 = arith.cmpi sge, %3, %327 : vector<8x128xi32>
    %329 = arith.extui %328 : vector<8x128xi1> to vector<8x128xi32>
    %330 = arith.sitofp %329 : vector<8x128xi32> to vector<8x128xf32>
    %331 = vector.shape_cast %330 : vector<8x128xf32> to vector<1x8x128xf32>
    %cst_59 = arith.constant dense<0.000000e+00> : vector<1xf32>
    %332 = vector.multi_reduction <add>, %331, %cst_59 [1, 2] : vector<1x8x128xf32> to vector<1xf32>
    %333 = vector.shape_cast %332 : vector<1xf32> to vector<1x1x1xf32>
    %334 = vector.extract %333[0, 0, 0] : f32 from vector<1x1x1xf32>
    %335 = vector.broadcast %318 : i32 to vector<8x128xi32>
    %336 = arith.cmpi sge, %3, %335 : vector<8x128xi32>
    %337 = arith.extui %336 : vector<8x128xi1> to vector<8x128xi32>
    %338 = arith.sitofp %337 : vector<8x128xi32> to vector<8x128xf32>
    %339 = vector.shape_cast %338 : vector<8x128xf32> to vector<1x8x128xf32>
    %cst_60 = arith.constant dense<0.000000e+00> : vector<1xf32>
    %340 = vector.multi_reduction <add>, %339, %cst_60 [1, 2] : vector<1x8x128xf32> to vector<1xf32>
    %341 = vector.shape_cast %340 : vector<1xf32> to vector<1x1x1xf32>
    %342 = vector.extract %341[0, 0, 0] : f32 from vector<1x1x1xf32>
    %cst_61 = arith.constant 5.000000e+02 : f32
    %343 = arith.cmpf oge, %326, %cst_61 : f32
    %344 = arith.select %343, %316, %315 : i32
    %cst_62 = arith.constant 5.000000e+02 : f32
    %345 = arith.cmpf oge, %334, %cst_62 : f32
    %346 = arith.select %345, %317, %344 : i32
    %cst_63 = arith.constant 5.000000e+02 : f32
    %347 = arith.cmpf oge, %342, %cst_63 : f32
    %348 = arith.select %347, %318, %346 : i32
    %c256_i32 = arith.constant 256 : i32
    %349 = arith.ori %348, %c256_i32 : i32
    %c512_i32 = arith.constant 512 : i32
    %350 = arith.ori %348, %c512_i32 : i32
    %c768_i32 = arith.constant 768 : i32
    %351 = arith.ori %348, %c768_i32 : i32
    %352 = vector.broadcast %349 : i32 to vector<8x128xi32>
    %353 = arith.cmpi sge, %3, %352 : vector<8x128xi32>
    %354 = arith.extui %353 : vector<8x128xi1> to vector<8x128xi32>
    %355 = arith.sitofp %354 : vector<8x128xi32> to vector<8x128xf32>
    %356 = vector.shape_cast %355 : vector<8x128xf32> to vector<1x8x128xf32>
    %cst_64 = arith.constant dense<0.000000e+00> : vector<1xf32>
    %357 = vector.multi_reduction <add>, %356, %cst_64 [1, 2] : vector<1x8x128xf32> to vector<1xf32>
    %358 = vector.shape_cast %357 : vector<1xf32> to vector<1x1x1xf32>
    %359 = vector.extract %358[0, 0, 0] : f32 from vector<1x1x1xf32>
    %360 = vector.broadcast %350 : i32 to vector<8x128xi32>
    %361 = arith.cmpi sge, %3, %360 : vector<8x128xi32>
    %362 = arith.extui %361 : vector<8x128xi1> to vector<8x128xi32>
    %363 = arith.sitofp %362 : vector<8x128xi32> to vector<8x128xf32>
    %364 = vector.shape_cast %363 : vector<8x128xf32> to vector<1x8x128xf32>
    %cst_65 = arith.constant dense<0.000000e+00> : vector<1xf32>
    %365 = vector.multi_reduction <add>, %364, %cst_65 [1, 2] : vector<1x8x128xf32> to vector<1xf32>
    %366 = vector.shape_cast %365 : vector<1xf32> to vector<1x1x1xf32>
    %367 = vector.extract %366[0, 0, 0] : f32 from vector<1x1x1xf32>
    %368 = vector.broadcast %351 : i32 to vector<8x128xi32>
    %369 = arith.cmpi sge, %3, %368 : vector<8x128xi32>
    %370 = arith.extui %369 : vector<8x128xi1> to vector<8x128xi32>
    %371 = arith.sitofp %370 : vector<8x128xi32> to vector<8x128xf32>
    %372 = vector.shape_cast %371 : vector<8x128xf32> to vector<1x8x128xf32>
    %cst_66 = arith.constant dense<0.000000e+00> : vector<1xf32>
    %373 = vector.multi_reduction <add>, %372, %cst_66 [1, 2] : vector<1x8x128xf32> to vector<1xf32>
    %374 = vector.shape_cast %373 : vector<1xf32> to vector<1x1x1xf32>
    %375 = vector.extract %374[0, 0, 0] : f32 from vector<1x1x1xf32>
    %cst_67 = arith.constant 5.000000e+02 : f32
    %376 = arith.cmpf oge, %359, %cst_67 : f32
    %377 = arith.select %376, %349, %348 : i32
    %cst_68 = arith.constant 5.000000e+02 : f32
    %378 = arith.cmpf oge, %367, %cst_68 : f32
    %379 = arith.select %378, %350, %377 : i32
    %cst_69 = arith.constant 5.000000e+02 : f32
    %380 = arith.cmpf oge, %375, %cst_69 : f32
    %381 = arith.select %380, %351, %379 : i32
    %c64_i32 = arith.constant 64 : i32
    %382 = arith.ori %381, %c64_i32 : i32
    %c128_i32_70 = arith.constant 128 : i32
    %383 = arith.ori %381, %c128_i32_70 : i32
    %c192_i32 = arith.constant 192 : i32
    %384 = arith.ori %381, %c192_i32 : i32
    %385 = vector.broadcast %382 : i32 to vector<8x128xi32>
    %386 = arith.cmpi sge, %3, %385 : vector<8x128xi32>
    %387 = arith.extui %386 : vector<8x128xi1> to vector<8x128xi32>
    %388 = arith.sitofp %387 : vector<8x128xi32> to vector<8x128xf32>
    %389 = vector.shape_cast %388 : vector<8x128xf32> to vector<1x8x128xf32>
    %cst_71 = arith.constant dense<0.000000e+00> : vector<1xf32>
    %390 = vector.multi_reduction <add>, %389, %cst_71 [1, 2] : vector<1x8x128xf32> to vector<1xf32>
    %391 = vector.shape_cast %390 : vector<1xf32> to vector<1x1x1xf32>
    %392 = vector.extract %391[0, 0, 0] : f32 from vector<1x1x1xf32>
    %393 = vector.broadcast %383 : i32 to vector<8x128xi32>
    %394 = arith.cmpi sge, %3, %393 : vector<8x128xi32>
    %395 = arith.extui %394 : vector<8x128xi1> to vector<8x128xi32>
    %396 = arith.sitofp %395 : vector<8x128xi32> to vector<8x128xf32>
    %397 = vector.shape_cast %396 : vector<8x128xf32> to vector<1x8x128xf32>
    %cst_72 = arith.constant dense<0.000000e+00> : vector<1xf32>
    %398 = vector.multi_reduction <add>, %397, %cst_72 [1, 2] : vector<1x8x128xf32> to vector<1xf32>
    %399 = vector.shape_cast %398 : vector<1xf32> to vector<1x1x1xf32>
    %400 = vector.extract %399[0, 0, 0] : f32 from vector<1x1x1xf32>
    %401 = vector.broadcast %384 : i32 to vector<8x128xi32>
    %402 = arith.cmpi sge, %3, %401 : vector<8x128xi32>
    %403 = arith.extui %402 : vector<8x128xi1> to vector<8x128xi32>
    %404 = arith.sitofp %403 : vector<8x128xi32> to vector<8x128xf32>
    %405 = vector.shape_cast %404 : vector<8x128xf32> to vector<1x8x128xf32>
    %cst_73 = arith.constant dense<0.000000e+00> : vector<1xf32>
    %406 = vector.multi_reduction <add>, %405, %cst_73 [1, 2] : vector<1x8x128xf32> to vector<1xf32>
    %407 = vector.shape_cast %406 : vector<1xf32> to vector<1x1x1xf32>
    %408 = vector.extract %407[0, 0, 0] : f32 from vector<1x1x1xf32>
    %cst_74 = arith.constant 5.000000e+02 : f32
    %409 = arith.cmpf oge, %392, %cst_74 : f32
    %410 = arith.select %409, %382, %381 : i32
    %cst_75 = arith.constant 5.000000e+02 : f32
    %411 = arith.cmpf oge, %400, %cst_75 : f32
    %412 = arith.select %411, %383, %410 : i32
    %cst_76 = arith.constant 5.000000e+02 : f32
    %413 = arith.cmpf oge, %408, %cst_76 : f32
    %414 = arith.select %413, %384, %412 : i32
    %c16_i32 = arith.constant 16 : i32
    %415 = arith.ori %414, %c16_i32 : i32
    %c32_i32 = arith.constant 32 : i32
    %416 = arith.ori %414, %c32_i32 : i32
    %c48_i32 = arith.constant 48 : i32
    %417 = arith.ori %414, %c48_i32 : i32
    %418 = vector.broadcast %415 : i32 to vector<8x128xi32>
    %419 = arith.cmpi sge, %3, %418 : vector<8x128xi32>
    %420 = arith.extui %419 : vector<8x128xi1> to vector<8x128xi32>
    %421 = arith.sitofp %420 : vector<8x128xi32> to vector<8x128xf32>
    %422 = vector.shape_cast %421 : vector<8x128xf32> to vector<1x8x128xf32>
    %cst_77 = arith.constant dense<0.000000e+00> : vector<1xf32>
    %423 = vector.multi_reduction <add>, %422, %cst_77 [1, 2] : vector<1x8x128xf32> to vector<1xf32>
    %424 = vector.shape_cast %423 : vector<1xf32> to vector<1x1x1xf32>
    %425 = vector.extract %424[0, 0, 0] : f32 from vector<1x1x1xf32>
    %426 = vector.broadcast %416 : i32 to vector<8x128xi32>
    %427 = arith.cmpi sge, %3, %426 : vector<8x128xi32>
    %428 = arith.extui %427 : vector<8x128xi1> to vector<8x128xi32>
    %429 = arith.sitofp %428 : vector<8x128xi32> to vector<8x128xf32>
    %430 = vector.shape_cast %429 : vector<8x128xf32> to vector<1x8x128xf32>
    %cst_78 = arith.constant dense<0.000000e+00> : vector<1xf32>
    %431 = vector.multi_reduction <add>, %430, %cst_78 [1, 2] : vector<1x8x128xf32> to vector<1xf32>
    %432 = vector.shape_cast %431 : vector<1xf32> to vector<1x1x1xf32>
    %433 = vector.extract %432[0, 0, 0] : f32 from vector<1x1x1xf32>
    %434 = vector.broadcast %417 : i32 to vector<8x128xi32>
    %435 = arith.cmpi sge, %3, %434 : vector<8x128xi32>
    %436 = arith.extui %435 : vector<8x128xi1> to vector<8x128xi32>
    %437 = arith.sitofp %436 : vector<8x128xi32> to vector<8x128xf32>
    %438 = vector.shape_cast %437 : vector<8x128xf32> to vector<1x8x128xf32>
    %cst_79 = arith.constant dense<0.000000e+00> : vector<1xf32>
    %439 = vector.multi_reduction <add>, %438, %cst_79 [1, 2] : vector<1x8x128xf32> to vector<1xf32>
    %440 = vector.shape_cast %439 : vector<1xf32> to vector<1x1x1xf32>
    %441 = vector.extract %440[0, 0, 0] : f32 from vector<1x1x1xf32>
    %cst_80 = arith.constant 5.000000e+02 : f32
    %442 = arith.cmpf oge, %425, %cst_80 : f32
    %443 = arith.select %442, %415, %414 : i32
    %cst_81 = arith.constant 5.000000e+02 : f32
    %444 = arith.cmpf oge, %433, %cst_81 : f32
    %445 = arith.select %444, %416, %443 : i32
    %cst_82 = arith.constant 5.000000e+02 : f32
    %446 = arith.cmpf oge, %441, %cst_82 : f32
    %447 = arith.select %446, %417, %445 : i32
    %c4_i32 = arith.constant 4 : i32
    %448 = arith.ori %447, %c4_i32 : i32
    %c8_i32 = arith.constant 8 : i32
    %449 = arith.ori %447, %c8_i32 : i32
    %c12_i32 = arith.constant 12 : i32
    %450 = arith.ori %447, %c12_i32 : i32
    %451 = vector.broadcast %448 : i32 to vector<8x128xi32>
    %452 = arith.cmpi sge, %3, %451 : vector<8x128xi32>
    %453 = arith.extui %452 : vector<8x128xi1> to vector<8x128xi32>
    %454 = arith.sitofp %453 : vector<8x128xi32> to vector<8x128xf32>
    %455 = vector.shape_cast %454 : vector<8x128xf32> to vector<1x8x128xf32>
    %cst_83 = arith.constant dense<0.000000e+00> : vector<1xf32>
    %456 = vector.multi_reduction <add>, %455, %cst_83 [1, 2] : vector<1x8x128xf32> to vector<1xf32>
    %457 = vector.shape_cast %456 : vector<1xf32> to vector<1x1x1xf32>
    %458 = vector.extract %457[0, 0, 0] : f32 from vector<1x1x1xf32>
    %459 = vector.broadcast %449 : i32 to vector<8x128xi32>
    %460 = arith.cmpi sge, %3, %459 : vector<8x128xi32>
    %461 = arith.extui %460 : vector<8x128xi1> to vector<8x128xi32>
    %462 = arith.sitofp %461 : vector<8x128xi32> to vector<8x128xf32>
    %463 = vector.shape_cast %462 : vector<8x128xf32> to vector<1x8x128xf32>
    %cst_84 = arith.constant dense<0.000000e+00> : vector<1xf32>
    %464 = vector.multi_reduction <add>, %463, %cst_84 [1, 2] : vector<1x8x128xf32> to vector<1xf32>
    %465 = vector.shape_cast %464 : vector<1xf32> to vector<1x1x1xf32>
    %466 = vector.extract %465[0, 0, 0] : f32 from vector<1x1x1xf32>
    %467 = vector.broadcast %450 : i32 to vector<8x128xi32>
    %468 = arith.cmpi sge, %3, %467 : vector<8x128xi32>
    %469 = arith.extui %468 : vector<8x128xi1> to vector<8x128xi32>
    %470 = arith.sitofp %469 : vector<8x128xi32> to vector<8x128xf32>
    %471 = vector.shape_cast %470 : vector<8x128xf32> to vector<1x8x128xf32>
    %cst_85 = arith.constant dense<0.000000e+00> : vector<1xf32>
    %472 = vector.multi_reduction <add>, %471, %cst_85 [1, 2] : vector<1x8x128xf32> to vector<1xf32>
    %473 = vector.shape_cast %472 : vector<1xf32> to vector<1x1x1xf32>
    %474 = vector.extract %473[0, 0, 0] : f32 from vector<1x1x1xf32>
    %cst_86 = arith.constant 5.000000e+02 : f32
    %475 = arith.cmpf oge, %458, %cst_86 : f32
    %476 = arith.select %475, %448, %447 : i32
    %cst_87 = arith.constant 5.000000e+02 : f32
    %477 = arith.cmpf oge, %466, %cst_87 : f32
    %478 = arith.select %477, %449, %476 : i32
    %cst_88 = arith.constant 5.000000e+02 : f32
    %479 = arith.cmpf oge, %474, %cst_88 : f32
    %480 = arith.select %479, %450, %478 : i32
    %c1_i32 = arith.constant 1 : i32
    %481 = arith.ori %480, %c1_i32 : i32
    %c2_i32 = arith.constant 2 : i32
    %482 = arith.ori %480, %c2_i32 : i32
    %c3_i32 = arith.constant 3 : i32
    %483 = arith.ori %480, %c3_i32 : i32
    %484 = vector.broadcast %481 : i32 to vector<8x128xi32>
    %485 = arith.cmpi sge, %3, %484 : vector<8x128xi32>
    %486 = arith.extui %485 : vector<8x128xi1> to vector<8x128xi32>
    %487 = arith.sitofp %486 : vector<8x128xi32> to vector<8x128xf32>
    %488 = vector.shape_cast %487 : vector<8x128xf32> to vector<1x8x128xf32>
    %cst_89 = arith.constant dense<0.000000e+00> : vector<1xf32>
    %489 = vector.multi_reduction <add>, %488, %cst_89 [1, 2] : vector<1x8x128xf32> to vector<1xf32>
    %490 = vector.shape_cast %489 : vector<1xf32> to vector<1x1x1xf32>
    %491 = vector.extract %490[0, 0, 0] : f32 from vector<1x1x1xf32>
    %492 = vector.broadcast %482 : i32 to vector<8x128xi32>
    %493 = arith.cmpi sge, %3, %492 : vector<8x128xi32>
    %494 = arith.extui %493 : vector<8x128xi1> to vector<8x128xi32>
    %495 = arith.sitofp %494 : vector<8x128xi32> to vector<8x128xf32>
    %496 = vector.shape_cast %495 : vector<8x128xf32> to vector<1x8x128xf32>
    %cst_90 = arith.constant dense<0.000000e+00> : vector<1xf32>
    %497 = vector.multi_reduction <add>, %496, %cst_90 [1, 2] : vector<1x8x128xf32> to vector<1xf32>
    %498 = vector.shape_cast %497 : vector<1xf32> to vector<1x1x1xf32>
    %499 = vector.extract %498[0, 0, 0] : f32 from vector<1x1x1xf32>
    %500 = vector.broadcast %483 : i32 to vector<8x128xi32>
    %501 = arith.cmpi sge, %3, %500 : vector<8x128xi32>
    %502 = arith.extui %501 : vector<8x128xi1> to vector<8x128xi32>
    %503 = arith.sitofp %502 : vector<8x128xi32> to vector<8x128xf32>
    %504 = vector.shape_cast %503 : vector<8x128xf32> to vector<1x8x128xf32>
    %cst_91 = arith.constant dense<0.000000e+00> : vector<1xf32>
    %505 = vector.multi_reduction <add>, %504, %cst_91 [1, 2] : vector<1x8x128xf32> to vector<1xf32>
    %506 = vector.shape_cast %505 : vector<1xf32> to vector<1x1x1xf32>
    %507 = vector.extract %506[0, 0, 0] : f32 from vector<1x1x1xf32>
    %cst_92 = arith.constant 5.000000e+02 : f32
    %508 = arith.cmpf oge, %491, %cst_92 : f32
    %509 = arith.select %508, %481, %480 : i32
    %cst_93 = arith.constant 5.000000e+02 : f32
    %510 = arith.cmpf oge, %499, %cst_93 : f32
    %511 = arith.select %510, %482, %509 : i32
    %cst_94 = arith.constant 5.000000e+02 : f32
    %512 = arith.cmpf oge, %507, %cst_94 : f32
    %513 = arith.select %512, %483, %511 : i32
    %514 = vector.broadcast %513 : i32 to vector<8x128xi32>
    %515 = arith.cmpi sgt, %3, %514 : vector<8x128xi32>
    %516 = vector.broadcast %513 : i32 to vector<8x128xi32>
    %517 = arith.cmpi eq, %3, %516 : vector<8x128xi32>
    %518 = arith.extui %515 : vector<8x128xi1> to vector<8x128xi32>
    %519 = arith.sitofp %518 : vector<8x128xi32> to vector<8x128xf32>
    %520 = vector.shape_cast %519 : vector<8x128xf32> to vector<1x8x128xf32>
    %cst_95 = arith.constant dense<0.000000e+00> : vector<1xf32>
    %521 = vector.multi_reduction <add>, %520, %cst_95 [1, 2] : vector<1x8x128xf32> to vector<1xf32>
    %522 = vector.shape_cast %521 : vector<1xf32> to vector<1x1x1xf32>
    %523 = vector.extract %522[0, 0, 0] : f32 from vector<1x1x1xf32>
    %cst_96 = arith.constant 5.000000e+02 : f32
    %524 = arith.subf %cst_96, %523 : f32
    %c1023_i32 = arith.constant 1023 : i32
    %525 = vector.broadcast %c1023_i32 : i32 to vector<8x128xi32>
    %526 = arith.subi %525, %8 : vector<8x128xi32>
    %c0_i32_97 = arith.constant 0 : i32
    %c256_i32_98 = arith.constant 256 : i32
    %527 = arith.ori %c0_i32_97, %c256_i32_98 : i32
    %c0_i32_99 = arith.constant 0 : i32
    %c512_i32_100 = arith.constant 512 : i32
    %528 = arith.ori %c0_i32_99, %c512_i32_100 : i32
    %c0_i32_101 = arith.constant 0 : i32
    %c768_i32_102 = arith.constant 768 : i32
    %529 = arith.ori %c0_i32_101, %c768_i32_102 : i32
    %530 = vector.broadcast %527 : i32 to vector<8x128xi32>
    %531 = arith.cmpi sge, %526, %530 : vector<8x128xi32>
    %532 = arith.andi %517, %531 : vector<8x128xi1>
    %533 = arith.extui %532 : vector<8x128xi1> to vector<8x128xi32>
    %534 = arith.sitofp %533 : vector<8x128xi32> to vector<8x128xf32>
    %535 = vector.shape_cast %534 : vector<8x128xf32> to vector<1x8x128xf32>
    %cst_103 = arith.constant dense<0.000000e+00> : vector<1xf32>
    %536 = vector.multi_reduction <add>, %535, %cst_103 [1, 2] : vector<1x8x128xf32> to vector<1xf32>
    %537 = vector.shape_cast %536 : vector<1xf32> to vector<1x1x1xf32>
    %538 = vector.extract %537[0, 0, 0] : f32 from vector<1x1x1xf32>
    %539 = vector.broadcast %528 : i32 to vector<8x128xi32>
    %540 = arith.cmpi sge, %526, %539 : vector<8x128xi32>
    %541 = arith.andi %517, %540 : vector<8x128xi1>
    %542 = arith.extui %541 : vector<8x128xi1> to vector<8x128xi32>
    %543 = arith.sitofp %542 : vector<8x128xi32> to vector<8x128xf32>
    %544 = vector.shape_cast %543 : vector<8x128xf32> to vector<1x8x128xf32>
    %cst_104 = arith.constant dense<0.000000e+00> : vector<1xf32>
    %545 = vector.multi_reduction <add>, %544, %cst_104 [1, 2] : vector<1x8x128xf32> to vector<1xf32>
    %546 = vector.shape_cast %545 : vector<1xf32> to vector<1x1x1xf32>
    %547 = vector.extract %546[0, 0, 0] : f32 from vector<1x1x1xf32>
    %548 = vector.broadcast %529 : i32 to vector<8x128xi32>
    %549 = arith.cmpi sge, %526, %548 : vector<8x128xi32>
    %550 = arith.andi %517, %549 : vector<8x128xi1>
    %551 = arith.extui %550 : vector<8x128xi1> to vector<8x128xi32>
    %552 = arith.sitofp %551 : vector<8x128xi32> to vector<8x128xf32>
    %553 = vector.shape_cast %552 : vector<8x128xf32> to vector<1x8x128xf32>
    %cst_105 = arith.constant dense<0.000000e+00> : vector<1xf32>
    %554 = vector.multi_reduction <add>, %553, %cst_105 [1, 2] : vector<1x8x128xf32> to vector<1xf32>
    %555 = vector.shape_cast %554 : vector<1xf32> to vector<1x1x1xf32>
    %556 = vector.extract %555[0, 0, 0] : f32 from vector<1x1x1xf32>
    %557 = arith.cmpf oge, %538, %524 : f32
    %c0_i32_106 = arith.constant 0 : i32
    %558 = arith.select %557, %527, %c0_i32_106 : i32
    %559 = arith.cmpf oge, %547, %524 : f32
    %560 = arith.select %559, %528, %558 : i32
    %561 = arith.cmpf oge, %556, %524 : f32
    %562 = arith.select %561, %529, %560 : i32
    %c64_i32_107 = arith.constant 64 : i32
    %563 = arith.ori %562, %c64_i32_107 : i32
    %c128_i32_108 = arith.constant 128 : i32
    %564 = arith.ori %562, %c128_i32_108 : i32
    %c192_i32_109 = arith.constant 192 : i32
    %565 = arith.ori %562, %c192_i32_109 : i32
    %566 = vector.broadcast %563 : i32 to vector<8x128xi32>
    %567 = arith.cmpi sge, %526, %566 : vector<8x128xi32>
    %568 = arith.andi %517, %567 : vector<8x128xi1>
    %569 = arith.extui %568 : vector<8x128xi1> to vector<8x128xi32>
    %570 = arith.sitofp %569 : vector<8x128xi32> to vector<8x128xf32>
    %571 = vector.shape_cast %570 : vector<8x128xf32> to vector<1x8x128xf32>
    %cst_110 = arith.constant dense<0.000000e+00> : vector<1xf32>
    %572 = vector.multi_reduction <add>, %571, %cst_110 [1, 2] : vector<1x8x128xf32> to vector<1xf32>
    %573 = vector.shape_cast %572 : vector<1xf32> to vector<1x1x1xf32>
    %574 = vector.extract %573[0, 0, 0] : f32 from vector<1x1x1xf32>
    %575 = vector.broadcast %564 : i32 to vector<8x128xi32>
    %576 = arith.cmpi sge, %526, %575 : vector<8x128xi32>
    %577 = arith.andi %517, %576 : vector<8x128xi1>
    %578 = arith.extui %577 : vector<8x128xi1> to vector<8x128xi32>
    %579 = arith.sitofp %578 : vector<8x128xi32> to vector<8x128xf32>
    %580 = vector.shape_cast %579 : vector<8x128xf32> to vector<1x8x128xf32>
    %cst_111 = arith.constant dense<0.000000e+00> : vector<1xf32>
    %581 = vector.multi_reduction <add>, %580, %cst_111 [1, 2] : vector<1x8x128xf32> to vector<1xf32>
    %582 = vector.shape_cast %581 : vector<1xf32> to vector<1x1x1xf32>
    %583 = vector.extract %582[0, 0, 0] : f32 from vector<1x1x1xf32>
    %584 = vector.broadcast %565 : i32 to vector<8x128xi32>
    %585 = arith.cmpi sge, %526, %584 : vector<8x128xi32>
    %586 = arith.andi %517, %585 : vector<8x128xi1>
    %587 = arith.extui %586 : vector<8x128xi1> to vector<8x128xi32>
    %588 = arith.sitofp %587 : vector<8x128xi32> to vector<8x128xf32>
    %589 = vector.shape_cast %588 : vector<8x128xf32> to vector<1x8x128xf32>
    %cst_112 = arith.constant dense<0.000000e+00> : vector<1xf32>
    %590 = vector.multi_reduction <add>, %589, %cst_112 [1, 2] : vector<1x8x128xf32> to vector<1xf32>
    %591 = vector.shape_cast %590 : vector<1xf32> to vector<1x1x1xf32>
    %592 = vector.extract %591[0, 0, 0] : f32 from vector<1x1x1xf32>
    %593 = arith.cmpf oge, %574, %524 : f32
    %594 = arith.select %593, %563, %562 : i32
    %595 = arith.cmpf oge, %583, %524 : f32
    %596 = arith.select %595, %564, %594 : i32
    %597 = arith.cmpf oge, %592, %524 : f32
    %598 = arith.select %597, %565, %596 : i32
    %c16_i32_113 = arith.constant 16 : i32
    %599 = arith.ori %598, %c16_i32_113 : i32
    %c32_i32_114 = arith.constant 32 : i32
    %600 = arith.ori %598, %c32_i32_114 : i32
    %c48_i32_115 = arith.constant 48 : i32
    %601 = arith.ori %598, %c48_i32_115 : i32
    %602 = vector.broadcast %599 : i32 to vector<8x128xi32>
    %603 = arith.cmpi sge, %526, %602 : vector<8x128xi32>
    %604 = arith.andi %517, %603 : vector<8x128xi1>
    %605 = arith.extui %604 : vector<8x128xi1> to vector<8x128xi32>
    %606 = arith.sitofp %605 : vector<8x128xi32> to vector<8x128xf32>
    %607 = vector.shape_cast %606 : vector<8x128xf32> to vector<1x8x128xf32>
    %cst_116 = arith.constant dense<0.000000e+00> : vector<1xf32>
    %608 = vector.multi_reduction <add>, %607, %cst_116 [1, 2] : vector<1x8x128xf32> to vector<1xf32>
    %609 = vector.shape_cast %608 : vector<1xf32> to vector<1x1x1xf32>
    %610 = vector.extract %609[0, 0, 0] : f32 from vector<1x1x1xf32>
    %611 = vector.broadcast %600 : i32 to vector<8x128xi32>
    %612 = arith.cmpi sge, %526, %611 : vector<8x128xi32>
    %613 = arith.andi %517, %612 : vector<8x128xi1>
    %614 = arith.extui %613 : vector<8x128xi1> to vector<8x128xi32>
    %615 = arith.sitofp %614 : vector<8x128xi32> to vector<8x128xf32>
    %616 = vector.shape_cast %615 : vector<8x128xf32> to vector<1x8x128xf32>
    %cst_117 = arith.constant dense<0.000000e+00> : vector<1xf32>
    %617 = vector.multi_reduction <add>, %616, %cst_117 [1, 2] : vector<1x8x128xf32> to vector<1xf32>
    %618 = vector.shape_cast %617 : vector<1xf32> to vector<1x1x1xf32>
    %619 = vector.extract %618[0, 0, 0] : f32 from vector<1x1x1xf32>
    %620 = vector.broadcast %601 : i32 to vector<8x128xi32>
    %621 = arith.cmpi sge, %526, %620 : vector<8x128xi32>
    %622 = arith.andi %517, %621 : vector<8x128xi1>
    %623 = arith.extui %622 : vector<8x128xi1> to vector<8x128xi32>
    %624 = arith.sitofp %623 : vector<8x128xi32> to vector<8x128xf32>
    %625 = vector.shape_cast %624 : vector<8x128xf32> to vector<1x8x128xf32>
    %cst_118 = arith.constant dense<0.000000e+00> : vector<1xf32>
    %626 = vector.multi_reduction <add>, %625, %cst_118 [1, 2] : vector<1x8x128xf32> to vector<1xf32>
    %627 = vector.shape_cast %626 : vector<1xf32> to vector<1x1x1xf32>
    %628 = vector.extract %627[0, 0, 0] : f32 from vector<1x1x1xf32>
    %629 = arith.cmpf oge, %610, %524 : f32
    %630 = arith.select %629, %599, %598 : i32
    %631 = arith.cmpf oge, %619, %524 : f32
    %632 = arith.select %631, %600, %630 : i32
    %633 = arith.cmpf oge, %628, %524 : f32
    %634 = arith.select %633, %601, %632 : i32
    %c4_i32_119 = arith.constant 4 : i32
    %635 = arith.ori %634, %c4_i32_119 : i32
    %c8_i32_120 = arith.constant 8 : i32
    %636 = arith.ori %634, %c8_i32_120 : i32
    %c12_i32_121 = arith.constant 12 : i32
    %637 = arith.ori %634, %c12_i32_121 : i32
    %638 = vector.broadcast %635 : i32 to vector<8x128xi32>
    %639 = arith.cmpi sge, %526, %638 : vector<8x128xi32>
    %640 = arith.andi %517, %639 : vector<8x128xi1>
    %641 = arith.extui %640 : vector<8x128xi1> to vector<8x128xi32>
    %642 = arith.sitofp %641 : vector<8x128xi32> to vector<8x128xf32>
    %643 = vector.shape_cast %642 : vector<8x128xf32> to vector<1x8x128xf32>
    %cst_122 = arith.constant dense<0.000000e+00> : vector<1xf32>
    %644 = vector.multi_reduction <add>, %643, %cst_122 [1, 2] : vector<1x8x128xf32> to vector<1xf32>
    %645 = vector.shape_cast %644 : vector<1xf32> to vector<1x1x1xf32>
    %646 = vector.extract %645[0, 0, 0] : f32 from vector<1x1x1xf32>
    %647 = vector.broadcast %636 : i32 to vector<8x128xi32>
    %648 = arith.cmpi sge, %526, %647 : vector<8x128xi32>
    %649 = arith.andi %517, %648 : vector<8x128xi1>
    %650 = arith.extui %649 : vector<8x128xi1> to vector<8x128xi32>
    %651 = arith.sitofp %650 : vector<8x128xi32> to vector<8x128xf32>
    %652 = vector.shape_cast %651 : vector<8x128xf32> to vector<1x8x128xf32>
    %cst_123 = arith.constant dense<0.000000e+00> : vector<1xf32>
    %653 = vector.multi_reduction <add>, %652, %cst_123 [1, 2] : vector<1x8x128xf32> to vector<1xf32>
    %654 = vector.shape_cast %653 : vector<1xf32> to vector<1x1x1xf32>
    %655 = vector.extract %654[0, 0, 0] : f32 from vector<1x1x1xf32>
    %656 = vector.broadcast %637 : i32 to vector<8x128xi32>
    %657 = arith.cmpi sge, %526, %656 : vector<8x128xi32>
    %658 = arith.andi %517, %657 : vector<8x128xi1>
    %659 = arith.extui %658 : vector<8x128xi1> to vector<8x128xi32>
    %660 = arith.sitofp %659 : vector<8x128xi32> to vector<8x128xf32>
    %661 = vector.shape_cast %660 : vector<8x128xf32> to vector<1x8x128xf32>
    %cst_124 = arith.constant dense<0.000000e+00> : vector<1xf32>
    %662 = vector.multi_reduction <add>, %661, %cst_124 [1, 2] : vector<1x8x128xf32> to vector<1xf32>
    %663 = vector.shape_cast %662 : vector<1xf32> to vector<1x1x1xf32>
    %664 = vector.extract %663[0, 0, 0] : f32 from vector<1x1x1xf32>
    %665 = arith.cmpf oge, %646, %524 : f32
    %666 = arith.select %665, %635, %634 : i32
    %667 = arith.cmpf oge, %655, %524 : f32
    %668 = arith.select %667, %636, %666 : i32
    %669 = arith.cmpf oge, %664, %524 : f32
    %670 = arith.select %669, %637, %668 : i32
    %c1_i32_125 = arith.constant 1 : i32
    %671 = arith.ori %670, %c1_i32_125 : i32
    %c2_i32_126 = arith.constant 2 : i32
    %672 = arith.ori %670, %c2_i32_126 : i32
    %c3_i32_127 = arith.constant 3 : i32
    %673 = arith.ori %670, %c3_i32_127 : i32
    %674 = vector.broadcast %671 : i32 to vector<8x128xi32>
    %675 = arith.cmpi sge, %526, %674 : vector<8x128xi32>
    %676 = arith.andi %517, %675 : vector<8x128xi1>
    %677 = arith.extui %676 : vector<8x128xi1> to vector<8x128xi32>
    %678 = arith.sitofp %677 : vector<8x128xi32> to vector<8x128xf32>
    %679 = vector.shape_cast %678 : vector<8x128xf32> to vector<1x8x128xf32>
    %cst_128 = arith.constant dense<0.000000e+00> : vector<1xf32>
    %680 = vector.multi_reduction <add>, %679, %cst_128 [1, 2] : vector<1x8x128xf32> to vector<1xf32>
    %681 = vector.shape_cast %680 : vector<1xf32> to vector<1x1x1xf32>
    %682 = vector.extract %681[0, 0, 0] : f32 from vector<1x1x1xf32>
    %683 = vector.broadcast %672 : i32 to vector<8x128xi32>
    %684 = arith.cmpi sge, %526, %683 : vector<8x128xi32>
    %685 = arith.andi %517, %684 : vector<8x128xi1>
    %686 = arith.extui %685 : vector<8x128xi1> to vector<8x128xi32>
    %687 = arith.sitofp %686 : vector<8x128xi32> to vector<8x128xf32>
    %688 = vector.shape_cast %687 : vector<8x128xf32> to vector<1x8x128xf32>
    %cst_129 = arith.constant dense<0.000000e+00> : vector<1xf32>
    %689 = vector.multi_reduction <add>, %688, %cst_129 [1, 2] : vector<1x8x128xf32> to vector<1xf32>
    %690 = vector.shape_cast %689 : vector<1xf32> to vector<1x1x1xf32>
    %691 = vector.extract %690[0, 0, 0] : f32 from vector<1x1x1xf32>
    %692 = vector.broadcast %673 : i32 to vector<8x128xi32>
    %693 = arith.cmpi sge, %526, %692 : vector<8x128xi32>
    %694 = arith.andi %517, %693 : vector<8x128xi1>
    %695 = arith.extui %694 : vector<8x128xi1> to vector<8x128xi32>
    %696 = arith.sitofp %695 : vector<8x128xi32> to vector<8x128xf32>
    %697 = vector.shape_cast %696 : vector<8x128xf32> to vector<1x8x128xf32>
    %cst_130 = arith.constant dense<0.000000e+00> : vector<1xf32>
    %698 = vector.multi_reduction <add>, %697, %cst_130 [1, 2] : vector<1x8x128xf32> to vector<1xf32>
    %699 = vector.shape_cast %698 : vector<1xf32> to vector<1x1x1xf32>
    %700 = vector.extract %699[0, 0, 0] : f32 from vector<1x1x1xf32>
    %701 = arith.cmpf oge, %682, %524 : f32
    %702 = arith.select %701, %671, %670 : i32
    %703 = arith.cmpf oge, %691, %524 : f32
    %704 = arith.select %703, %672, %702 : i32
    %705 = arith.cmpf oge, %700, %524 : f32
    %706 = arith.select %705, %673, %704 : i32
    %707 = vector.broadcast %706 : i32 to vector<8x128xi32>
    %708 = arith.cmpi sge, %526, %707 : vector<8x128xi32>
    %709 = arith.andi %517, %708 : vector<8x128xi1>
    %710 = arith.ori %515, %709 : vector<8x128xi1>
    %711 = arith.extui %710 : vector<8x128xi1> to vector<8x128xi32>
    %712 = arith.sitofp %711 : vector<8x128xi32> to vector<8x128xf32>
    %c0_131 = arith.constant 0 : index
    %c0_132 = arith.constant 0 : index
    %c0_133 = arith.constant 0 : index
    %713 = vector.load %arg1[%c0_131, %c0_132, %c0_133] : memref<1x8x128xf32, #tpu.memory_space<vmem>>, vector<1x8x128xf32>
    %714 = vector.shape_cast %713 : vector<1x8x128xf32> to vector<8x128xf32>
    %715 = arith.addf %714, %712 : vector<8x128xf32>
    %c0_134 = arith.constant 0 : index
    %c0_135 = arith.constant 0 : index
    %c0_136 = arith.constant 0 : index
    %716 = vector.load %arg3[%c0_134, %c0_135, %c0_136] : memref<1x8x128xf32, #tpu.memory_space<vmem>>, vector<1x8x128xf32>
    %717 = vector.shape_cast %716 : vector<1x8x128xf32> to vector<8x128xf32>
    %718 = vector.shape_cast %715 : vector<8x128xf32> to vector<1x8x128xf32>
    tpu.vector_store %arg3[%c0_134, %c0_135, %c0_136], %718 {strides = array<i32>} : memref<1x8x128xf32, #tpu.memory_space<vmem>>, vector<1x8x128xf32>,
    return
  }
  func.func @transform_0(%arg0: i32) -> (i32, i32, i32) {
    %c0_i32 = arith.constant 0 : i32
    %c0_i32_0 = arith.constant 0 : i32
    %c0_i32_1 = arith.constant 0 : i32
    return %arg0, %c0_i32, %c0_i32_0 : i32, i32, i32
  }
  func.func @transform_1(%arg0: i32) -> (i32, i32, i32) {
    %c0_i32 = arith.constant 0 : i32
    %c0_i32_0 = arith.constant 0 : i32
    %c0_i32_1 = arith.constant 0 : i32
    return %arg0, %c0_i32, %c0_i32_0 : i32, i32, i32
  }
  func.func @transform_2(%arg0: i32) -> (i32, i32, i32) {
    %c0_i32 = arith.constant 0 : i32
    %c0_i32_0 = arith.constant 0 : i32
    %c0_i32_1 = arith.constant 0 : i32
    return %arg0, %c0_i32, %c0_i32_0 : i32, i32, i32
  }
}

</mosaic_0001>

<llo_original>
// kernel: topk_weight_update.1
$region0: #{topk_weight_update.1}
  #allocation0 [shape = 'u32[]', space=smem, size = 0x4, offset = 0x4, fixed_abs, tag = 'smem constant byte address 0x4 - core index']
  #allocation1 [shape = 'u32[144,128]{1,0:T(1,128)}', space=vmem, size = 0x12000, scoped, tag = 'internal scratch']
  %s0 = inlined_call_operand.vmem [shape: f32[2,8,128], index: 0, kind: input, shape index: {}, may-alias: {0,2}]
  %s1 = inlined_call_operand.vmem [shape: f32[2,8,128], index: 1, kind: input, shape index: {}]
  %s2 = inlined_call_operand.vmem [shape: f32[2,8,128], index: 2, kind: output, shape index: {}, may-alias: {0,2}]
  %s3 = sld [smem:[#allocation0]]
  $region41: #{topk_weight_update.1} parent=0
    _
  %s5 = ssub.s32 1, %s3
  %s6 = scalar_select 0, %s5, %s3
  loop: start=0, step=1, limit=4
  $region2: #{topk_weight_update.1} parent=0 // loop_pre_header
    _
  $region3: #{topk_weight_update.1} parent=0 // loop_header
    %s8 = sphi 0, %s12
    %p9 = scmp.ge.s32.totalorder %s8, 4
    %s18 = sphi 0, %s20
    %s21 = sphi 0, %s18
    %s22 = sphi 0, %s21
    %s38 = sphi 0, %s22
    %s44 = sphi 0, %s46
    %s47 = sphi 0, %s44
    %s48 = sphi 0, %s47
    %s64 = sphi 0, %s48
    %s70 = sphi 0, %s72
    %s73 = sphi 0, %s70
    %s74 = sphi 0, %s73
    %s90 = sphi 0, %s74
  $region4: #{topk_weight_update.1} parent=0 // loop_header_branch
    %11 = sbr.rel (%p9) target = $region8
  $region5: #{topk_weight_update.1} parent=0 // loop_body
    %s13 = ssub.s32 %s8, 1
    %s14 = ssub.s32 %s8, 2
    %s15 = sadd.s32 %s8, 1
    %s16 = ssub.s32 %s8, %s15
    %p17 = scmp.eq.s32.totalorder %s16, 0
    %s19 = sadd.s32 %s18, 1
    %s20 = scalar_select %p17, %s18, %s19
    %p23 = pneg %p17
    %p24 = scmp.eq.s32.totalorder %s8, 1
    %p25 = por %p23, %p24
    %p26 = scmp.ne.s32.totalorder %s18, %s21
    %p27 = scmp.eq.s32.totalorder %s8, 0
    %p28 = por %p26, %p27
    %p29 = scmp.ne.s32.totalorder %s18, %s21
    %p30 = scmp.eq.s32.totalorder %s13, 1
    %p31 = por %p29, %p30
    %p32 = scmp.ne.s32.totalorder %s21, %s22
    %p33 = scmp.eq.s32.totalorder %s13, 0
    %p34 = por %p32, %p33
    %p35 = scmp.ne.s32.totalorder %s21, %s22
    %p36 = scmp.eq.s32.totalorder %s14, 1
    %p37 = por %p35, %p36
    %p39 = scmp.ne.s32.totalorder %s22, %s38
    %p40 = scmp.eq.s32.totalorder %s14, 0
    %p41 = por %p39, %p40
    %s42 = ssub.s32 %s8, %s15
    %p43 = scmp.eq.s32.totalorder %s42, 0
    %s45 = sadd.s32 %s44, 1
    %s46 = scalar_select %p43, %s44, %s45
    %p49 = pneg %p43
    %p50 = scmp.eq.s32.totalorder %s8, 1
    %p51 = por %p49, %p50
    %p52 = scmp.ne.s32.totalorder %s44, %s47
    %p53 = scmp.eq.s32.totalorder %s8, 0
    %p54 = por %p52, %p53
    %p55 = scmp.ne.s32.totalorder %s44, %s47
    %p56 = scmp.eq.s32.totalorder %s13, 1
    %p57 = por %p55, %p56
    %p58 = scmp.ne.s32.totalorder %s47, %s48
    %p59 = scmp.eq.s32.totalorder %s13, 0
    %p60 = por %p58, %p59
    %p61 = scmp.ne.s32.totalorder %s47, %s48
    %p62 = scmp.eq.s32.totalorder %s14, 1
    %p63 = por %p61, %p62
    %p65 = scmp.ne.s32.totalorder %s48, %s64
    %p66 = scmp.eq.s32.totalorder %s14, 0
    %p67 = por %p65, %p66
    %s68 = ssub.s32 %s8, %s15
    %p69 = scmp.eq.s32.totalorder %s68, 0
    %s71 = sadd.s32 %s70, 1
    %s72 = scalar_select %p69, %s70, %s71
    %p75 = pneg %p69
    %p76 = scmp.eq.s32.totalorder %s8, 1
    %p77 = por %p75, %p76
    %p78 = scmp.ne.s32.totalorder %s70, %s73
    %p79 = scmp.eq.s32.totalorder %s8, 0
    %p80 = por %p78, %p79
    %p81 = scmp.ne.s32.totalorder %s70, %s73
    %p82 = scmp.eq.s32.totalorder %s13, 1
    %p83 = por %p81, %p82
    %p84 = scmp.ne.s32.totalorder %s73, %s74
    %p85 = scmp.eq.s32.totalorder %s13, 0
    %p86 = por %p84, %p85
    %p87 = scmp.ne.s32.totalorder %s73, %s74
    %p88 = scmp.eq.s32.totalorder %s14, 1
    %p89 = por %p87, %p88
    %p91 = scmp.ne.s32.totalorder %s74, %s90
    %p92 = scmp.eq.s32.totalorder %s14, 0
    %p93 = por %p91, %p92
    %p94 = scmp.le.s32.totalorder 1, %s8
    %p95 = scmp.lt.s32.totalorder %s8, 3
    %p96 = pnand %p94, %p95
    %p97 = pneg %p96
    // Predicated region
    $region9: #{topk_weight_update.1} parent=5 // pred_check
      _
    $region10: #{topk_weight_update.1} parent=5 // pred_check_branch
      %99 = sbr.rel (%p96) target = $region12
    $region11: #{topk_weight_update.1} parent=5 // pred_region
      %s100 = ssub.s32 %s8, 1
    $region12: #{topk_weight_update.1} parent=5 // pred_fallthru
      _
    %p101 = scmp.lt.s32.totalorder %s8, 2
    // Predicated region
    $region13: #{topk_weight_update.1} parent=5 // pred_check
      %p102 = pneg %p101
    $region14: #{topk_weight_update.1} parent=5 // pred_check_branch
      %104 = sbr.rel (%p102) target = $region16
    $region15: #{topk_weight_update.1} parent=5 // pred_region
      // Predicated region
      $region17: #{topk_weight_update.1} parent=15 // pred_check
        %p105 = pneg %p28
      $region18: #{topk_weight_update.1} parent=15 // pred_check_branch
        %107 = sbr.rel (%p105) target = $region20
      $region19: #{topk_weight_update.1} parent=15 // pred_region
        %p108 = scmp.lt.s32.totalorder %s8, 1
        %s109 = scalar_select %p108, %s8, 1
        %s110 = smul.addr %s109, 8
        %s111 = scalar_lea.vmem %s0, %s110
      $region20: #{topk_weight_update.1} parent=15 // pred_fallthru
        _
      // Predicated region
      $region21: #{topk_weight_update.1} parent=15 // pred_check
        %p112 = pneg %p54
      $region22: #{topk_weight_update.1} parent=15 // pred_check_branch
        %114 = sbr.rel (%p112) target = $region24
      $region23: #{topk_weight_update.1} parent=15 // pred_region
        %p115 = scmp.lt.s32.totalorder %s8, 1
        %s116 = scalar_select %p115, %s8, 1
        %s117 = smul.addr %s116, 8
        %s118 = scalar_lea.vmem %s1, %s117
      $region24: #{topk_weight_update.1} parent=15 // pred_fallthru
        _
    $region16: #{topk_weight_update.1} parent=5 // pred_fallthru
      _
    %p119 = scmp.le.s32.totalorder 1, %s8
    %p120 = scmp.lt.s32.totalorder %s8, 3
    %p121 = pnand %p119, %p120
    %p122 = pneg %p121
    // Predicated region
    $region25: #{topk_weight_update.1} parent=5 // pred_check
      _
    $region26: #{topk_weight_update.1} parent=5 // pred_check_branch
      %124 = sbr.rel (%p121) target = $region28
    $region27: #{topk_weight_update.1} parent=5 // pred_region
      %s125 = ssub.s32 %s8, 1
      %p126 = scmp.lt.s32.totalorder %s13, 1
      %s127 = scalar_select %p126, %s13, 1
      %s128 = smul.addr %s127, 8
      %s129 = scalar_lea.vmem %s0, %s128
      %p130 = pneg %p34
      %p131 = pneg %p31
      %p132 = scmp.lt.s32.totalorder %s13, 1
      %s133 = scalar_select %p132, %s13, 1
      %s134 = smul.addr %s133, 8
      %s135 = scalar_lea.vmem %s1, %s134
      %p136 = pneg %p60
      %p137 = pneg %p57
      %p138 = pneg %p86
      %p139 = pneg %p83
      %p140 = scmp.lt.s32.totalorder %s13, 1
      %s141 = scalar_select %p140, %s13, 1
      %s142 = smul.addr %s141, 8
      %s143 = scalar_lea.vmem %s2, %s142
      %p144 = scmp.lt.s32.totalorder %s13, 1
      %s145 = scalar_select %p144, %s13, 1
      %s146 = smul.addr %s145, 8
      %s147 = scalar_lea.vmem %s0, %s146
      %p148 = scmp.lt.s32.totalorder %s13, 1
      %s149 = scalar_select %p148, %s13, 1
      %s150 = smul.addr %s149, 8
      %s151 = scalar_lea.vmem %s1, %s150
      %p152 = scmp.lt.s32.totalorder %s13, 1
      %s153 = scalar_select %p152, %s13, 1
      %s154 = smul.addr %s153, 8
      %s155 = scalar_lea.vmem %s2, %s154
      %v156 = vld [vmem:[%s151] sm:$0xff]
      %v157 = vand.u32 2147483647, %v156
      %v159 = vlaneseq
      %v160 = vshrl.u32 %v159, 7
      %v161 = vlaneseq
      %v162 = vand.u32 %v161, 127
      %v163 = vmul.u32 %v160, 128
      %v164 = vadd.s32 %v163, %v162
      %vm165 = vcmp.ge.s32.totalorder %v157, 1073741824
      %v166 = vsel %vm165, 1, 0
      %v167 = vcvt.s32.f32 %v166
      %168 = vadd.xlane.f32.xlu0 %v167
      %v169 = vpop.xlane.xlu0 %168
      %v170 = vrot.slane %v169, 4
      %v171 = vadd.f32 %v169, %v170
      %v172 = vrot.slane %v171, 2
      %v173 = vadd.f32 %v171, %v172
      %v174 = vrot.slane %v173, 1
      %v175 = vadd.f32 %v173, %v174
      %s176 = vtos %v175
      %p177 = scmp.ge.f32.partialorder %s176, 500.0
      %s178 = scalar_select %p177, 1073741824, 0
      %s179 = sor.u32 %s178, 268435456
      %s180 = sor.u32 %s178, 536870912
      %s181 = sor.u32 %s178, 805306368
      %v182 = vstv %s179
      %vm183 = vcmp.ge.s32.totalorder %v157, %v182
      %v184 = vsel %vm183, 1, 0
      %v185 = vcvt.s32.f32 %v184
      %186 = vadd.xlane.f32.xlu0 %v185
      %v187 = vpop.xlane.xlu0 %186
      %v188 = vrot.slane %v187, 4
      %v189 = vadd.f32 %v187, %v188
      %v190 = vrot.slane %v189, 2
      %v191 = vadd.f32 %v189, %v190
      %v192 = vrot.slane %v191, 1
      %v193 = vadd.f32 %v191, %v192
      %s194 = vtos %v193
      %v195 = vstv %s180
      %vm196 = vcmp.ge.s32.totalorder %v157, %v195
      %v197 = vsel %vm196, 1, 0
      %v198 = vcvt.s32.f32 %v197
      %199 = vadd.xlane.f32.xlu0 %v198
      %v200 = vpop.xlane.xlu0 %199
      %v201 = vrot.slane %v200, 4
      %v202 = vadd.f32 %v200, %v201
      %v203 = vrot.slane %v202, 2
      %v204 = vadd.f32 %v202, %v203
      %v205 = vrot.slane %v204, 1
      %v206 = vadd.f32 %v204, %v205
      %s207 = vtos %v206
      %v208 = vstv %s181
      %vm209 = vcmp.ge.s32.totalorder %v157, %v208
      %v210 = vsel %vm209, 1, 0
      %v211 = vcvt.s32.f32 %v210
      %212 = vadd.xlane.f32.xlu0 %v211
      %v213 = vpop.xlane.xlu0 %212
      %v214 = vrot.slane %v213, 4
      %v215 = vadd.f32 %v213, %v214
      %v216 = vrot.slane %v215, 2
      %v217 = vadd.f32 %v215, %v216
      %v218 = vrot.slane %v217, 1
      %v219 = vadd.f32 %v217, %v218
      %s220 = vtos %v219
      %p221 = scmp.ge.f32.partialorder %s194, 500.0
      %s222 = scalar_select %p221, %s179, %s178
      %p223 = scmp.ge.f32.partialorder %s207, 500.0
      %s224 = scalar_select %p223, %s180, %s222
      %p225 = scmp.ge.f32.partialorder %s220, 500.0
      %s226 = scalar_select %p225, %s181, %s224
      %s227 = sor.u32 %s226, 67108864
      %s228 = sor.u32 %s226, 134217728
      %s229 = sor.u32 %s226, 201326592
      %v230 = vstv %s227
      %vm231 = vcmp.ge.s32.totalorder %v157, %v230
      %v232 = vsel %vm231, 1, 0
      %v233 = vcvt.s32.f32 %v232
      %234 = vadd.xlane.f32.xlu0 %v233
      %v235 = vpop.xlane.xlu0 %234
      %v236 = vrot.slane %v235, 4
      %v237 = vadd.f32 %v235, %v236
      %v238 = vrot.slane %v237, 2
      %v239 = vadd.f32 %v237, %v238
      %v240 = vrot.slane %v239, 1
      %v241 = vadd.f32 %v239, %v240
      %s242 = vtos %v241
      %v243 = vstv %s228
      %vm244 = vcmp.ge.s32.totalorder %v157, %v243
      %v245 = vsel %vm244, 1, 0
      %v246 = vcvt.s32.f32 %v245
      %247 = vadd.xlane.f32.xlu0 %v246
      %v248 = vpop.xlane.xlu0 %247
      %v249 = vrot.slane %v248, 4
      %v250 = vadd.f32 %v248, %v249
      %v251 = vrot.slane %v250, 2
      %v252 = vadd.f32 %v250, %v251
      %v253 = vrot.slane %v252, 1
      %v254 = vadd.f32 %v252, %v253
      %s255 = vtos %v254
      %v256 = vstv %s229
      %vm257 = vcmp.ge.s32.totalorder %v157, %v256
      %v258 = vsel %vm257, 1, 0
      %v259 = vcvt.s32.f32 %v258
      %260 = vadd.xlane.f32.xlu0 %v259
      %v261 = vpop.xlane.xlu0 %260
      %v262 = vrot.slane %v261, 4
      %v263 = vadd.f32 %v261, %v262
      %v264 = vrot.slane %v263, 2
      %v265 = vadd.f32 %v263, %v264
      %v266 = vrot.slane %v265, 1
      %v267 = vadd.f32 %v265, %v266
      %s268 = vtos %v267
      %p269 = scmp.ge.f32.partialorder %s242, 500.0
      %s270 = scalar_select %p269, %s227, %s226
      %p271 = scmp.ge.f32.partialorder %s255, 500.0
      %s272 = scalar_select %p271, %s228, %s270
      %p273 = scmp.ge.f32.partialorder %s268, 500.0
      %s274 = scalar_select %p273, %s229, %s272
      %s275 = sor.u32 %s274, 16777216
      %s276 = sor.u32 %s274, 33554432
      %s277 = sor.u32 %s274, 50331648
      %v278 = vstv %s275
      %vm279 = vcmp.ge.s32.totalorder %v157, %v278
      %v280 = vsel %vm279, 1, 0
      %v281 = vcvt.s32.f32 %v280
      %282 = vadd.xlane.f32.xlu0 %v281
      %v283 = vpop.xlane.xlu0 %282
      %v284 = vrot.slane %v283, 4
      %v285 = vadd.f32 %v283, %v284
      %v286 = vrot.slane %v285, 2
      %v287 = vadd.f32 %v285, %v286
      %v288 = vrot.slane %v287, 1
      %v289 = vadd.f32 %v287, %v288
      %s290 = vtos %v289
      %v291 = vstv %s276
      %vm292 = vcmp.ge.s32.totalorder %v157, %v291
      %v293 = vsel %vm292, 1, 0
      %v294 = vcvt.s32.f32 %v293
      %295 = vadd.xlane.f32.xlu0 %v294
      %v296 = vpop.xlane.xlu0 %295
      %v297 = vrot.slane %v296, 4
      %v298 = vadd.f32 %v296, %v297
      %v299 = vrot.slane %v298, 2
      %v300 = vadd.f32 %v298, %v299
      %v301 = vrot.slane %v300, 1
      %v302 = vadd.f32 %v300, %v301
      %s303 = vtos %v302
      %v304 = vstv %s277
      %vm305 = vcmp.ge.s32.totalorder %v157, %v304
      %v306 = vsel %vm305, 1, 0
      %v307 = vcvt.s32.f32 %v306
      %308 = vadd.xlane.f32.xlu0 %v307
      %v309 = vpop.xlane.xlu0 %308
      %v310 = vrot.slane %v309, 4
      %v311 = vadd.f32 %v309, %v310
      %v312 = vrot.slane %v311, 2
      %v313 = vadd.f32 %v311, %v312
      %v314 = vrot.slane %v313, 1
      %v315 = vadd.f32 %v313, %v314
      %s316 = vtos %v315
      %p317 = scmp.ge.f32.partialorder %s290, 500.0
      %s318 = scalar_select %p317, %s275, %s274
      %p319 = scmp.ge.f32.partialorder %s303, 500.0
      %s320 = scalar_select %p319, %s276, %s318
      %p321 = scmp.ge.f32.partialorder %s316, 500.0
      %s322 = scalar_select %p321, %s277, %s320
      %s323 = sor.u32 %s322, 4194304
      %s324 = sor.u32 %s322, 8388608
      %s325 = sor.u32 %s322, 12582912
      %v326 = vstv %s323
      %vm327 = vcmp.ge.s32.totalorder %v157, %v326
      %v328 = vsel %vm327, 1, 0
      %v329 = vcvt.s32.f32 %v328
      %330 = vadd.xlane.f32.xlu0 %v329
      %v331 = vpop.xlane.xlu0 %330
      %v332 = vrot.slane %v331, 4
      %v333 = vadd.f32 %v331, %v332
      %v334 = vrot.slane %v333, 2
      %v335 = vadd.f32 %v333, %v334
      %v336 = vrot.slane %v335, 1
      %v337 = vadd.f32 %v335, %v336
      %s338 = vtos %v337
      %v339 = vstv %s324
      %vm340 = vcmp.ge.s32.totalorder %v157, %v339
      %v341 = vsel %vm340, 1, 0
      %v342 = vcvt.s32.f32 %v341
      %343 = vadd.xlane.f32.xlu0 %v342
      %v344 = vpop.xlane.xlu0 %343
      %v345 = vrot.slane %v344, 4
      %v346 = vadd.f32 %v344, %v345
      %v347 = vrot.slane %v346, 2
      %v348 = vadd.f32 %v346, %v347
      %v349 = vrot.slane %v348, 1
      %v350 = vadd.f32 %v348, %v349
      %s351 = vtos %v350
      %v352 = vstv %s325
      %vm353 = vcmp.ge.s32.totalorder %v157, %v352
      %v354 = vsel %vm353, 1, 0
      %v355 = vcvt.s32.f32 %v354
      %356 = vadd.xlane.f32.xlu0 %v355
      %v357 = vpop.xlane.xlu0 %356
      %v358 = vrot.slane %v357, 4
      %v359 = vadd.f32 %v357, %v358
      %v360 = vrot.slane %v359, 2
      %v361 = vadd.f32 %v359, %v360
      %v362 = vrot.slane %v361, 1
      %v363 = vadd.f32 %v361, %v362
      %s364 = vtos %v363
      %p365 = scmp.ge.f32.partialorder %s338, 500.0
      %s366 = scalar_select %p365, %s323, %s322
      %p367 = scmp.ge.f32.partialorder %s351, 500.0
      %s368 = scalar_select %p367, %s324, %s366
      %p369 = scmp.ge.f32.partialorder %s364, 500.0
      %s370 = scalar_select %p369, %s325, %s368
      %s371 = sor.u32 %s370, 1048576
      %s372 = sor.u32 %s370, 2097152
      %s373 = sor.u32 %s370, 3145728
      %v374 = vstv %s371
      %vm375 = vcmp.ge.s32.totalorder %v157, %v374
      %v376 = vsel %vm375, 1, 0
      %v377 = vcvt.s32.f32 %v376
      %378 = vadd.xlane.f32.xlu0 %v377
      %v379 = vpop.xlane.xlu0 %378
      %v380 = vrot.slane %v379, 4
      %v381 = vadd.f32 %v379, %v380
      %v382 = vrot.slane %v381, 2
      %v383 = vadd.f32 %v381, %v382
      %v384 = vrot.slane %v383, 1
      %v385 = vadd.f32 %v383, %v384
      %s386 = vtos %v385
      %v387 = vstv %s372
      %vm388 = vcmp.ge.s32.totalorder %v157, %v387
      %v389 = vsel %vm388, 1, 0
      %v390 = vcvt.s32.f32 %v389
      %391 = vadd.xlane.f32.xlu0 %v390
      %v392 = vpop.xlane.xlu0 %391
      %v393 = vrot.slane %v392, 4
      %v394 = vadd.f32 %v392, %v393
      %v395 = vrot.slane %v394, 2
      %v396 = vadd.f32 %v394, %v395
      %v397 = vrot.slane %v396, 1
      %v398 = vadd.f32 %v396, %v397
      %s399 = vtos %v398
      %v400 = vstv %s373
      %vm401 = vcmp.ge.s32.totalorder %v157, %v400
      %v402 = vsel %vm401, 1, 0
      %v403 = vcvt.s32.f32 %v402
      %404 = vadd.xlane.f32.xlu0 %v403
      %v405 = vpop.xlane.xlu0 %404
      %v406 = vrot.slane %v405, 4
      %v407 = vadd.f32 %v405, %v406
      %v408 = vrot.slane %v407, 2
      %v409 = vadd.f32 %v407, %v408
      %v410 = vrot.slane %v409, 1
      %v411 = vadd.f32 %v409, %v410
      %s412 = vtos %v411
      %p413 = scmp.ge.f32.partialorder %s386, 500.0
      %s414 = scalar_select %p413, %s371, %s370
      %p415 = scmp.ge.f32.partialorder %s399, 500.0
      %s416 = scalar_select %p415, %s372, %s414
      %p417 = scmp.ge.f32.partialorder %s412, 500.0
      %s418 = scalar_select %p417, %s373, %s416
      %s419 = sor.u32 %s418, 262144
      %s420 = sor.u32 %s418, 524288
      %s421 = sor.u32 %s418, 786432
      %v422 = vstv %s419
      %vm423 = vcmp.ge.s32.totalorder %v157, %v422
      %v424 = vsel %vm423, 1, 0
      %v425 = vcvt.s32.f32 %v424
      %426 = vadd.xlane.f32.xlu0 %v425
      %v427 = vpop.xlane.xlu0 %426
      %v428 = vrot.slane %v427, 4
      %v429 = vadd.f32 %v427, %v428
      %v430 = vrot.slane %v429, 2
      %v431 = vadd.f32 %v429, %v430
      %v432 = vrot.slane %v431, 1
      %v433 = vadd.f32 %v431, %v432
      %s434 = vtos %v433
      %v435 = vstv %s420
      %vm436 = vcmp.ge.s32.totalorder %v157, %v435
      %v437 = vsel %vm436, 1, 0
      %v438 = vcvt.s32.f32 %v437
      %439 = vadd.xlane.f32.xlu0 %v438
      %v440 = vpop.xlane.xlu0 %439
      %v441 = vrot.slane %v440, 4
      %v442 = vadd.f32 %v440, %v441
      %v443 = vrot.slane %v442, 2
      %v444 = vadd.f32 %v442, %v443
      %v445 = vrot.slane %v444, 1
      %v446 = vadd.f32 %v444, %v445
      %s447 = vtos %v446
      %v448 = vstv %s421
      %vm449 = vcmp.ge.s32.totalorder %v157, %v448
      %v450 = vsel %vm449, 1, 0
      %v451 = vcvt.s32.f32 %v450
      %452 = vadd.xlane.f32.xlu0 %v451
      %v453 = vpop.xlane.xlu0 %452
      %v454 = vrot.slane %v453, 4
      %v455 = vadd.f32 %v453, %v454
      %v456 = vrot.slane %v455, 2
      %v457 = vadd.f32 %v455, %v456
      %v458 = vrot.slane %v457, 1
      %v459 = vadd.f32 %v457, %v458
      %s460 = vtos %v459
      %p461 = scmp.ge.f32.partialorder %s434, 500.0
      %s462 = scalar_select %p461, %s419, %s418
      %p463 = scmp.ge.f32.partialorder %s447, 500.0
      %s464 = scalar_select %p463, %s420, %s462
      %p465 = scmp.ge.f32.partialorder %s460, 500.0
      %s466 = scalar_select %p465, %s421, %s464
      %s467 = sor.u32 %s466, 65536
      %s468 = sor.u32 %s466, 131072
      %s469 = sor.u32 %s466, 196608
      %v470 = vstv %s467
      %vm471 = vcmp.ge.s32.totalorder %v157, %v470
      %v472 = vsel %vm471, 1, 0
      %v473 = vcvt.s32.f32 %v472
      %474 = vadd.xlane.f32.xlu0 %v473
      %v475 = vpop.xlane.xlu0 %474
      %v476 = vrot.slane %v475, 4
      %v477 = vadd.f32 %v475, %v476
      %v478 = vrot.slane %v477, 2
      %v479 = vadd.f32 %v477, %v478
      %v480 = vrot.slane %v479, 1
      %v481 = vadd.f32 %v479, %v480
      %s482 = vtos %v481
      %v483 = vstv %s468
      %vm484 = vcmp.ge.s32.totalorder %v157, %v483
      %v485 = vsel %vm484, 1, 0
      %v486 = vcvt.s32.f32 %v485
      %487 = vadd.xlane.f32.xlu0 %v486
      %v488 = vpop.xlane.xlu0 %487
      %v489 = vrot.slane %v488, 4
      %v490 = vadd.f32 %v488, %v489
      %v491 = vrot.slane %v490, 2
      %v492 = vadd.f32 %v490, %v491
      %v493 = vrot.slane %v492, 1
      %v494 = vadd.f32 %v492, %v493
      %s495 = vtos %v494
      %v496 = vstv %s469
      %vm497 = vcmp.ge.s32.totalorder %v157, %v496
      %v498 = vsel %vm497, 1, 0
      %v499 = vcvt.s32.f32 %v498
      %500 = vadd.xlane.f32.xlu0 %v499
      %v501 = vpop.xlane.xlu0 %500
      %v502 = vrot.slane %v501, 4
      %v503 = vadd.f32 %v501, %v502
      %v504 = vrot.slane %v503, 2
      %v505 = vadd.f32 %v503, %v504
      %v506 = vrot.slane %v505, 1
      %v507 = vadd.f32 %v505, %v506
      %s508 = vtos %v507
      %p509 = scmp.ge.f32.partialorder %s482, 500.0
      %s510 = scalar_select %p509, %s467, %s466
      %p511 = scmp.ge.f32.partialorder %s495, 500.0
      %s512 = scalar_select %p511, %s468, %s510
      %p513 = scmp.ge.f32.partialorder %s508, 500.0
      %s514 = scalar_select %p513, %s469, %s512
      %s515 = sor.u32 %s514, 16384
      %s516 = sor.u32 %s514, 32768
      %s517 = sor.u32 %s514, 49152
      %v518 = vstv %s515
      %vm519 = vcmp.ge.s32.totalorder %v157, %v518
      %v520 = vsel %vm519, 1, 0
      %v521 = vcvt.s32.f32 %v520
      %522 = vadd.xlane.f32.xlu0 %v521
      %v523 = vpop.xlane.xlu0 %522
      %v524 = vrot.slane %v523, 4
      %v525 = vadd.f32 %v523, %v524
      %v526 = vrot.slane %v525, 2
      %v527 = vadd.f32 %v525, %v526
      %v528 = vrot.slane %v527, 1
      %v529 = vadd.f32 %v527, %v528
      %s530 = vtos %v529
      %v531 = vstv %s516
      %vm532 = vcmp.ge.s32.totalorder %v157, %v531
      %v533 = vsel %vm532, 1, 0
      %v534 = vcvt.s32.f32 %v533
      %535 = vadd.xlane.f32.xlu0 %v534
      %v536 = vpop.xlane.xlu0 %535
      %v537 = vrot.slane %v536, 4
      %v538 = vadd.f32 %v536, %v537
      %v539 = vrot.slane %v538, 2
      %v540 = vadd.f32 %v538, %v539
      %v541 = vrot.slane %v540, 1
      %v542 = vadd.f32 %v540, %v541
      %s543 = vtos %v542
      %v544 = vstv %s517
      %vm545 = vcmp.ge.s32.totalorder %v157, %v544
      %v546 = vsel %vm545, 1, 0
      %v547 = vcvt.s32.f32 %v546
      %548 = vadd.xlane.f32.xlu0 %v547
      %v549 = vpop.xlane.xlu0 %548
      %v550 = vrot.slane %v549, 4
      %v551 = vadd.f32 %v549, %v550
      %v552 = vrot.slane %v551, 2
      %v553 = vadd.f32 %v551, %v552
      %v554 = vrot.slane %v553, 1
      %v555 = vadd.f32 %v553, %v554
      %s556 = vtos %v555
      %p557 = scmp.ge.f32.partialorder %s530, 500.0
      %s558 = scalar_select %p557, %s515, %s514
      %p559 = scmp.ge.f32.partialorder %s543, 500.0
      %s560 = scalar_select %p559, %s516, %s558
      %p561 = scmp.ge.f32.partialorder %s556, 500.0
      %s562 = scalar_select %p561, %s517, %s560
      %s563 = sor.u32 %s562, 4096
      %s564 = sor.u32 %s562, 8192
      %s565 = sor.u32 %s562, 12288
      %v566 = vstv %s563
      %vm567 = vcmp.ge.s32.totalorder %v157, %v566
      %v568 = vsel %vm567, 1, 0
      %v569 = vcvt.s32.f32 %v568
      %570 = vadd.xlane.f32.xlu0 %v569
      %v571 = vpop.xlane.xlu0 %570
      %v572 = vrot.slane %v571, 4
      %v573 = vadd.f32 %v571, %v572
      %v574 = vrot.slane %v573, 2
      %v575 = vadd.f32 %v573, %v574
      %v576 = vrot.slane %v575, 1
      %v577 = vadd.f32 %v575, %v576
      %s578 = vtos %v577
      %v579 = vstv %s564
      %vm580 = vcmp.ge.s32.totalorder %v157, %v579
      %v581 = vsel %vm580, 1, 0
      %v582 = vcvt.s32.f32 %v581
      %583 = vadd.xlane.f32.xlu0 %v582
      %v584 = vpop.xlane.xlu0 %583
      %v585 = vrot.slane %v584, 4
      %v586 = vadd.f32 %v584, %v585
      %v587 = vrot.slane %v586, 2
      %v588 = vadd.f32 %v586, %v587
      %v589 = vrot.slane %v588, 1
      %v590 = vadd.f32 %v588, %v589
      %s591 = vtos %v590
      %v592 = vstv %s565
      %vm593 = vcmp.ge.s32.totalorder %v157, %v592
      %v594 = vsel %vm593, 1, 0
      %v595 = vcvt.s32.f32 %v594
      %596 = vadd.xlane.f32.xlu0 %v595
      %v597 = vpop.xlane.xlu0 %596
      %v598 = vrot.slane %v597, 4
      %v599 = vadd.f32 %v597, %v598
      %v600 = vrot.slane %v599, 2
      %v601 = vadd.f32 %v599, %v600
      %v602 = vrot.slane %v601, 1
      %v603 = vadd.f32 %v601, %v602
      %s604 = vtos %v603
      %p605 = scmp.ge.f32.partialorder %s578, 500.0
      %s606 = scalar_select %p605, %s563, %s562
      %p607 = scmp.ge.f32.partialorder %s591, 500.0
      %s608 = scalar_select %p607, %s564, %s606
      %p609 = scmp.ge.f32.partialorder %s604, 500.0
      %s610 = scalar_select %p609, %s565, %s608
      %s611 = sor.u32 %s610, 1024
      %s612 = sor.u32 %s610, 2048
      %s613 = sor.u32 %s610, 3072
      %v614 = vstv %s611
      %vm615 = vcmp.ge.s32.totalorder %v157, %v614
      %v616 = vsel %vm615, 1, 0
      %v617 = vcvt.s32.f32 %v616
      %618 = vadd.xlane.f32.xlu0 %v617
      %v619 = vpop.xlane.xlu0 %618
      %v620 = vrot.slane %v619, 4
      %v621 = vadd.f32 %v619, %v620
      %v622 = vrot.slane %v621, 2
      %v623 = vadd.f32 %v621, %v622
      %v624 = vrot.slane %v623, 1
      %v625 = vadd.f32 %v623, %v624
      %s626 = vtos %v625
      %v627 = vstv %s612
      %vm628 = vcmp.ge.s32.totalorder %v157, %v627
      %v629 = vsel %vm628, 1, 0
      %v630 = vcvt.s32.f32 %v629
      %631 = vadd.xlane.f32.xlu0 %v630
      %v632 = vpop.xlane.xlu0 %631
      %v633 = vrot.slane %v632, 4
      %v634 = vadd.f32 %v632, %v633
      %v635 = vrot.slane %v634, 2
      %v636 = vadd.f32 %v634, %v635
      %v637 = vrot.slane %v636, 1
      %v638 = vadd.f32 %v636, %v637
      %s639 = vtos %v638
      %v640 = vstv %s613
      %vm641 = vcmp.ge.s32.totalorder %v157, %v640
      %v642 = vsel %vm641, 1, 0
      %v643 = vcvt.s32.f32 %v642
      %644 = vadd.xlane.f32.xlu0 %v643
      %v645 = vpop.xlane.xlu0 %644
      %v646 = vrot.slane %v645, 4
      %v647 = vadd.f32 %v645, %v646
      %v648 = vrot.slane %v647, 2
      %v649 = vadd.f32 %v647, %v648
      %v650 = vrot.slane %v649, 1
      %v651 = vadd.f32 %v649, %v650
      %s652 = vtos %v651
      %p653 = scmp.ge.f32.partialorder %s626, 500.0
      %s654 = scalar_select %p653, %s611, %s610
      %p655 = scmp.ge.f32.partialorder %s639, 500.0
      %s656 = scalar_select %p655, %s612, %s654
      %p657 = scmp.ge.f32.partialorder %s652, 500.0
      %s658 = scalar_select %p657, %s613, %s656
      %s659 = sor.u32 %s658, 256
      %s660 = sor.u32 %s658, 512
      %s661 = sor.u32 %s658, 768
      %v662 = vstv %s659
      %vm663 = vcmp.ge.s32.totalorder %v157, %v662
      %v664 = vsel %vm663, 1, 0
      %v665 = vcvt.s32.f32 %v664
      %666 = vadd.xlane.f32.xlu0 %v665
      %v667 = vpop.xlane.xlu0 %666
      %v668 = vrot.slane %v667, 4
      %v669 = vadd.f32 %v667, %v668
      %v670 = vrot.slane %v669, 2
      %v671 = vadd.f32 %v669, %v670
      %v672 = vrot.slane %v671, 1
      %v673 = vadd.f32 %v671, %v672
      %s674 = vtos %v673
      %v675 = vstv %s660
      %vm676 = vcmp.ge.s32.totalorder %v157, %v675
      %v677 = vsel %vm676, 1, 0
      %v678 = vcvt.s32.f32 %v677
      %679 = vadd.xlane.f32.xlu0 %v678
      %v680 = vpop.xlane.xlu0 %679
      %v681 = vrot.slane %v680, 4
      %v682 = vadd.f32 %v680, %v681
      %v683 = vrot.slane %v682, 2
      %v684 = vadd.f32 %v682, %v683
      %v685 = vrot.slane %v684, 1
      %v686 = vadd.f32 %v684, %v685
      %s687 = vtos %v686
      %v688 = vstv %s661
      %vm689 = vcmp.ge.s32.totalorder %v157, %v688
      %v690 = vsel %vm689, 1, 0
      %v691 = vcvt.s32.f32 %v690
      %692 = vadd.xlane.f32.xlu0 %v691
      %v693 = vpop.xlane.xlu0 %692
      %v694 = vrot.slane %v693, 4
      %v695 = vadd.f32 %v693, %v694
      %v696 = vrot.slane %v695, 2
      %v697 = vadd.f32 %v695, %v696
      %v698 = vrot.slane %v697, 1
      %v699 = vadd.f32 %v697, %v698
      %s700 = vtos %v699
      %p701 = scmp.ge.f32.partialorder %s674, 500.0
      %s702 = scalar_select %p701, %s659, %s658
      %p703 = scmp.ge.f32.partialorder %s687, 500.0
      %s704 = scalar_select %p703, %s660, %s702
      %p705 = scmp.ge.f32.partialorder %s700, 500.0
      %s706 = scalar_select %p705, %s661, %s704
      %s707 = sor.u32 %s706, 64
      %s708 = sor.u32 %s706, 128
      %s709 = sor.u32 %s706, 192
      %v710 = vstv %s707
      %vm711 = vcmp.ge.s32.totalorder %v157, %v710
      %v712 = vsel %vm711, 1, 0
      %v713 = vcvt.s32.f32 %v712
      %714 = vadd.xlane.f32.xlu0 %v713
      %v715 = vpop.xlane.xlu0 %714
      %v716 = vrot.slane %v715, 4
      %v717 = vadd.f32 %v715, %v716
      %v718 = vrot.slane %v717, 2
      %v719 = vadd.f32 %v717, %v718
      %v720 = vrot.slane %v719, 1
      %v721 = vadd.f32 %v719, %v720
      %s722 = vtos %v721
      %v723 = vstv %s708
      %vm724 = vcmp.ge.s32.totalorder %v157, %v723
      %v725 = vsel %vm724, 1, 0
      %v726 = vcvt.s32.f32 %v725
      %727 = vadd.xlane.f32.xlu0 %v726
      %v728 = vpop.xlane.xlu0 %727
      %v729 = vrot.slane %v728, 4
      %v730 = vadd.f32 %v728, %v729
      %v731 = vrot.slane %v730, 2
      %v732 = vadd.f32 %v730, %v731
      %v733 = vrot.slane %v732, 1
      %v734 = vadd.f32 %v732, %v733
      %s735 = vtos %v734
      %v736 = vstv %s709
      %vm737 = vcmp.ge.s32.totalorder %v157, %v736
      %v738 = vsel %vm737, 1, 0
      %v739 = vcvt.s32.f32 %v738
      %740 = vadd.xlane.f32.xlu0 %v739
      %v741 = vpop.xlane.xlu0 %740
      %v742 = vrot.slane %v741, 4
      %v743 = vadd.f32 %v741, %v742
      %v744 = vrot.slane %v743, 2
      %v745 = vadd.f32 %v743, %v744
      %v746 = vrot.slane %v745, 1
      %v747 = vadd.f32 %v745, %v746
      %s748 = vtos %v747
      %p749 = scmp.ge.f32.partialorder %s722, 500.0
      %s750 = scalar_select %p749, %s707, %s706
      %p751 = scmp.ge.f32.partialorder %s735, 500.0
      %s752 = scalar_select %p751, %s708, %s750
      %p753 = scmp.ge.f32.partialorder %s748, 500.0
      %s754 = scalar_select %p753, %s709, %s752
      %s755 = sor.u32 %s754, 16
      %s756 = sor.u32 %s754, 32
      %s757 = sor.u32 %s754, 48
      %v758 = vstv %s755
      %vm759 = vcmp.ge.s32.totalorder %v157, %v758
      %v760 = vsel %vm759, 1, 0
      %v761 = vcvt.s32.f32 %v760
      %762 = vadd.xlane.f32.xlu0 %v761
      %v763 = vpop.xlane.xlu0 %762
      %v764 = vrot.slane %v763, 4
      %v765 = vadd.f32 %v763, %v764
      %v766 = vrot.slane %v765, 2
      %v767 = vadd.f32 %v765, %v766
      %v768 = vrot.slane %v767, 1
      %v769 = vadd.f32 %v767, %v768
      %s770 = vtos %v769
      %v771 = vstv %s756
      %vm772 = vcmp.ge.s32.totalorder %v157, %v771
      %v773 = vsel %vm772, 1, 0
      %v774 = vcvt.s32.f32 %v773
      %775 = vadd.xlane.f32.xlu0 %v774
      %v776 = vpop.xlane.xlu0 %775
      %v777 = vrot.slane %v776, 4
      %v778 = vadd.f32 %v776, %v777
      %v779 = vrot.slane %v778, 2
      %v780 = vadd.f32 %v778, %v779
      %v781 = vrot.slane %v780, 1
      %v782 = vadd.f32 %v780, %v781
      %s783 = vtos %v782
      %v784 = vstv %s757
      %vm785 = vcmp.ge.s32.totalorder %v157, %v784
      %v786 = vsel %vm785, 1, 0
      %v787 = vcvt.s32.f32 %v786
      %788 = vadd.xlane.f32.xlu0 %v787
      %v789 = vpop.xlane.xlu0 %788
      %v790 = vrot.slane %v789, 4
      %v791 = vadd.f32 %v789, %v790
      %v792 = vrot.slane %v791, 2
      %v793 = vadd.f32 %v791, %v792
      %v794 = vrot.slane %v793, 1
      %v795 = vadd.f32 %v793, %v794
      %s796 = vtos %v795
      %p797 = scmp.ge.f32.partialorder %s770, 500.0
      %s798 = scalar_select %p797, %s755, %s754
      %p799 = scmp.ge.f32.partialorder %s783, 500.0
      %s800 = scalar_select %p799, %s756, %s798
      %p801 = scmp.ge.f32.partialorder %s796, 500.0
      %s802 = scalar_select %p801, %s757, %s800
      %s803 = sor.u32 %s802, 4
      %s804 = sor.u32 %s802, 8
      %s805 = sor.u32 %s802, 12
      %v806 = vstv %s803
      %vm807 = vcmp.ge.s32.totalorder %v157, %v806
      %v808 = vsel %vm807, 1, 0
      %v809 = vcvt.s32.f32 %v808
      %810 = vadd.xlane.f32.xlu0 %v809
      %v811 = vpop.xlane.xlu0 %810
      %v812 = vrot.slane %v811, 4
      %v813 = vadd.f32 %v811, %v812
      %v814 = vrot.slane %v813, 2
      %v815 = vadd.f32 %v813, %v814
      %v816 = vrot.slane %v815, 1
      %v817 = vadd.f32 %v815, %v816
      %s818 = vtos %v817
      %v819 = vstv %s804
      %vm820 = vcmp.ge.s32.totalorder %v157, %v819
      %v821 = vsel %vm820, 1, 0
      %v822 = vcvt.s32.f32 %v821
      %823 = vadd.xlane.f32.xlu0 %v822
      %v824 = vpop.xlane.xlu0 %823
      %v825 = vrot.slane %v824, 4
      %v826 = vadd.f32 %v824, %v825
      %v827 = vrot.slane %v826, 2
      %v828 = vadd.f32 %v826, %v827
      %v829 = vrot.slane %v828, 1
      %v830 = vadd.f32 %v828, %v829
      %s831 = vtos %v830
      %v832 = vstv %s805
      %vm833 = vcmp.ge.s32.totalorder %v157, %v832
      %v834 = vsel %vm833, 1, 0
      %v835 = vcvt.s32.f32 %v834
      %836 = vadd.xlane.f32.xlu0 %v835
      %v837 = vpop.xlane.xlu0 %836
      %v838 = vrot.slane %v837, 4
      %v839 = vadd.f32 %v837, %v838
      %v840 = vrot.slane %v839, 2
      %v841 = vadd.f32 %v839, %v840
      %v842 = vrot.slane %v841, 1
      %v843 = vadd.f32 %v841, %v842
      %s844 = vtos %v843
      %p845 = scmp.ge.f32.partialorder %s818, 500.0
      %s846 = scalar_select %p845, %s803, %s802
      %p847 = scmp.ge.f32.partialorder %s831, 500.0
      %s848 = scalar_select %p847, %s804, %s846
      %p849 = scmp.ge.f32.partialorder %s844, 500.0
      %s850 = scalar_select %p849, %s805, %s848
      %s851 = sor.u32 %s850, 1
      %s852 = sor.u32 %s850, 2
      %s853 = sor.u32 %s850, 3
      %v854 = vstv %s851
      %vm855 = vcmp.ge.s32.totalorder %v157, %v854
      %v856 = vsel %vm855, 1, 0
      %v857 = vcvt.s32.f32 %v856
      %858 = vadd.xlane.f32.xlu0 %v857
      %v859 = vpop.xlane.xlu0 %858
      %v860 = vrot.slane %v859, 4
      %v861 = vadd.f32 %v859, %v860
      %v862 = vrot.slane %v861, 2
      %v863 = vadd.f32 %v861, %v862
      %v864 = vrot.slane %v863, 1
      %v865 = vadd.f32 %v863, %v864
      %s866 = vtos %v865
      %v867 = vstv %s852
      %vm868 = vcmp.ge.s32.totalorder %v157, %v867
      %v869 = vsel %vm868, 1, 0
      %v870 = vcvt.s32.f32 %v869
      %871 = vadd.xlane.f32.xlu0 %v870
      %v872 = vpop.xlane.xlu0 %871
      %v873 = vrot.slane %v872, 4
      %v874 = vadd.f32 %v872, %v873
      %v875 = vrot.slane %v874, 2
      %v876 = vadd.f32 %v874, %v875
      %v877 = vrot.slane %v876, 1
      %v878 = vadd.f32 %v876, %v877
      %s879 = vtos %v878
      %v880 = vstv %s853
      %vm881 = vcmp.ge.s32.totalorder %v157, %v880
      %v882 = vsel %vm881, 1, 0
      %v883 = vcvt.s32.f32 %v882
      %884 = vadd.xlane.f32.xlu0 %v883
      %v885 = vpop.xlane.xlu0 %884
      %v886 = vrot.slane %v885, 4
      %v887 = vadd.f32 %v885, %v886
      %v888 = vrot.slane %v887, 2
      %v889 = vadd.f32 %v887, %v888
      %v890 = vrot.slane %v889, 1
      %v891 = vadd.f32 %v889, %v890
      %s892 = vtos %v891
      %p893 = scmp.ge.f32.partialorder %s866, 500.0
      %s894 = scalar_select %p893, %s851, %s850
      %p895 = scmp.ge.f32.partialorder %s879, 500.0
      %s896 = scalar_select %p895, %s852, %s894
      %p897 = scmp.ge.f32.partialorder %s892, 500.0
      %s898 = scalar_select %p897, %s853, %s896
      %v899 = vstv %s898
      %vm900 = vcmp.gt.s32.totalorder %v157, %v899
      %vm901 = vcmp.eq.s32.totalorder %v157, %v899
      %v902 = vsel %vm900, 1, 0
      %v903 = vcvt.s32.f32 %v902
      %904 = vadd.xlane.f32.xlu0 %v903
      %v905 = vpop.xlane.xlu0 %904
      %v906 = vrot.slane %v905, 4
      %v907 = vadd.f32 %v905, %v906
      %v908 = vrot.slane %v907, 2
      %v909 = vadd.f32 %v907, %v908
      %v910 = vrot.slane %v909, 1
      %v911 = vadd.f32 %v909, %v910
      %s912 = vtos %v911
      %s913 = ssub.f32 500.0, %s912
      %v914 = vsub.s32 1023, %v164
      %vm915 = vcmp.ge.s32.totalorder %v914, 256
      %vm916 = vmand %vm901, %vm915
      %v917 = vsel %vm916, 1, 0
      %v918 = vcvt.s32.f32 %v917
      %919 = vadd.xlane.f32.xlu0 %v918
      %v920 = vpop.xlane.xlu0 %919
      %v921 = vrot.slane %v920, 4
      %v922 = vadd.f32 %v920, %v921
      %v923 = vrot.slane %v922, 2
      %v924 = vadd.f32 %v922, %v923
      %v925 = vrot.slane %v924, 1
      %v926 = vadd.f32 %v924, %v925
      %s927 = vtos %v926
      %vm928 = vcmp.ge.s32.totalorder %v914, 512
      %vm929 = vmand %vm901, %vm928
      %v930 = vsel %vm929, 1, 0
      %v931 = vcvt.s32.f32 %v930
      %932 = vadd.xlane.f32.xlu0 %v931
      %v933 = vpop.xlane.xlu0 %932
      %v934 = vrot.slane %v933, 4
      %v935 = vadd.f32 %v933, %v934
      %v936 = vrot.slane %v935, 2
      %v937 = vadd.f32 %v935, %v936
      %v938 = vrot.slane %v937, 1
      %v939 = vadd.f32 %v937, %v938
      %s940 = vtos %v939
      %vm941 = vcmp.ge.s32.totalorder %v914, 768
      %vm942 = vmand %vm901, %vm941
      %v943 = vsel %vm942, 1, 0
      %v944 = vcvt.s32.f32 %v943
      %945 = vadd.xlane.f32.xlu0 %v944
      %v946 = vpop.xlane.xlu0 %945
      %v947 = vrot.slane %v946, 4
      %v948 = vadd.f32 %v946, %v947
      %v949 = vrot.slane %v948, 2
      %v950 = vadd.f32 %v948, %v949
      %v951 = vrot.slane %v950, 1
      %v952 = vadd.f32 %v950, %v951
      %s953 = vtos %v952
      %p954 = scmp.ge.f32.partialorder %s927, %s913
      %s955 = scalar_select %p954, 256, 0
      %p956 = scmp.ge.f32.partialorder %s940, %s913
      %s957 = scalar_select %p956, 512, %s955
      %p958 = scmp.ge.f32.partialorder %s953, %s913
      %s959 = scalar_select %p958, 768, %s957
      %s960 = sor.u32 %s959, 64
      %s961 = sor.u32 %s959, 128
      %s962 = sor.u32 %s959, 192
      %v963 = vstv %s960
      %vm964 = vcmp.ge.s32.totalorder %v914, %v963
      %vm965 = vmand %vm901, %vm964
      %v966 = vsel %vm965, 1, 0
      %v967 = vcvt.s32.f32 %v966
      %968 = vadd.xlane.f32.xlu0 %v967
      %v969 = vpop.xlane.xlu0 %968
      %v970 = vrot.slane %v969, 4
      %v971 = vadd.f32 %v969, %v970
      %v972 = vrot.slane %v971, 2
      %v973 = vadd.f32 %v971, %v972
      %v974 = vrot.slane %v973, 1
      %v975 = vadd.f32 %v973, %v974
      %s976 = vtos %v975
      %v977 = vstv %s961
      %vm978 = vcmp.ge.s32.totalorder %v914, %v977
      %vm979 = vmand %vm901, %vm978
      %v980 = vsel %vm979, 1, 0
      %v981 = vcvt.s32.f32 %v980
      %982 = vadd.xlane.f32.xlu0 %v981
      %v983 = vpop.xlane.xlu0 %982
      %v984 = vrot.slane %v983, 4
      %v985 = vadd.f32 %v983, %v984
      %v986 = vrot.slane %v985, 2
      %v987 = vadd.f32 %v985, %v986
      %v988 = vrot.slane %v987, 1
      %v989 = vadd.f32 %v987, %v988
      %s990 = vtos %v989
      %v991 = vstv %s962
      %vm992 = vcmp.ge.s32.totalorder %v914, %v991
      %vm993 = vmand %vm901, %vm992
      %v994 = vsel %vm993, 1, 0
      %v995 = vcvt.s32.f32 %v994
      %996 = vadd.xlane.f32.xlu0 %v995
      %v997 = vpop.xlane.xlu0 %996
      %v998 = vrot.slane %v997, 4
      %v999 = vadd.f32 %v997, %v998
      %v1000 = vrot.slane %v999, 2
      %v1001 = vadd.f32 %v999, %v1000
      %v1002 = vrot.slane %v1001, 1
      %v1003 = vadd.f32 %v1001, %v1002
      %s1004 = vtos %v1003
      %p1005 = scmp.ge.f32.partialorder %s976, %s913
      %s1006 = scalar_select %p1005, %s960, %s959
      %p1007 = scmp.ge.f32.partialorder %s990, %s913
      %s1008 = scalar_select %p1007, %s961, %s1006
      %p1009 = scmp.ge.f32.partialorder %s1004, %s913
      %s1010 = scalar_select %p1009, %s962, %s1008
      %s1011 = sor.u32 %s1010, 16
      %s1012 = sor.u32 %s1010, 32
      %s1013 = sor.u32 %s1010, 48
      %v1014 = vstv %s1011
      %vm1015 = vcmp.ge.s32.totalorder %v914, %v1014
      %vm1016 = vmand %vm901, %vm1015
      %v1017 = vsel %vm1016, 1, 0
      %v1018 = vcvt.s32.f32 %v1017
      %1019 = vadd.xlane.f32.xlu0 %v1018
      %v1020 = vpop.xlane.xlu0 %1019
      %v1021 = vrot.slane %v1020, 4
      %v1022 = vadd.f32 %v1020, %v1021
      %v1023 = vrot.slane %v1022, 2
      %v1024 = vadd.f32 %v1022, %v1023
      %v1025 = vrot.slane %v1024, 1
      %v1026 = vadd.f32 %v1024, %v1025
      %s1027 = vtos %v1026
      %v1028 = vstv %s1012
      %vm1029 = vcmp.ge.s32.totalorder %v914, %v1028
      %vm1030 = vmand %vm901, %vm1029
      %v1031 = vsel %vm1030, 1, 0
      %v1032 = vcvt.s32.f32 %v1031
      %1033 = vadd.xlane.f32.xlu0 %v1032
      %v1034 = vpop.xlane.xlu0 %1033
      %v1035 = vrot.slane %v1034, 4
      %v1036 = vadd.f32 %v1034, %v1035
      %v1037 = vrot.slane %v1036, 2
      %v1038 = vadd.f32 %v1036, %v1037
      %v1039 = vrot.slane %v1038, 1
      %v1040 = vadd.f32 %v1038, %v1039
      %s1041 = vtos %v1040
      %v1042 = vstv %s1013
      %vm1043 = vcmp.ge.s32.totalorder %v914, %v1042
      %vm1044 = vmand %vm901, %vm1043
      %v1045 = vsel %vm1044, 1, 0
      %v1046 = vcvt.s32.f32 %v1045
      %1047 = vadd.xlane.f32.xlu0 %v1046
      %v1048 = vpop.xlane.xlu0 %1047
      %v1049 = vrot.slane %v1048, 4
      %v1050 = vadd.f32 %v1048, %v1049
      %v1051 = vrot.slane %v1050, 2
      %v1052 = vadd.f32 %v1050, %v1051
      %v1053 = vrot.slane %v1052, 1
      %v1054 = vadd.f32 %v1052, %v1053
      %s1055 = vtos %v1054
      %p1056 = scmp.ge.f32.partialorder %s1027, %s913
      %s1057 = scalar_select %p1056, %s1011, %s1010
      %p1058 = scmp.ge.f32.partialorder %s1041, %s913
      %s1059 = scalar_select %p1058, %s1012, %s1057
      %p1060 = scmp.ge.f32.partialorder %s1055, %s913
      %s1061 = scalar_select %p1060, %s1013, %s1059
      %s1062 = sor.u32 %s1061, 4
      %s1063 = sor.u32 %s1061, 8
      %s1064 = sor.u32 %s1061, 12
      %v1065 = vstv %s1062
      %vm1066 = vcmp.ge.s32.totalorder %v914, %v1065
      %vm1067 = vmand %vm901, %vm1066
      %v1068 = vsel %vm1067, 1, 0
      %v1069 = vcvt.s32.f32 %v1068
      %1070 = vadd.xlane.f32.xlu0 %v1069
      %v1071 = vpop.xlane.xlu0 %1070
      %v1072 = vrot.slane %v1071, 4
      %v1073 = vadd.f32 %v1071, %v1072
      %v1074 = vrot.slane %v1073, 2
      %v1075 = vadd.f32 %v1073, %v1074
      %v1076 = vrot.slane %v1075, 1
      %v1077 = vadd.f32 %v1075, %v1076
      %s1078 = vtos %v1077
      %v1079 = vstv %s1063
      %vm1080 = vcmp.ge.s32.totalorder %v914, %v1079
      %vm1081 = vmand %vm901, %vm1080
      %v1082 = vsel %vm1081, 1, 0
      %v1083 = vcvt.s32.f32 %v1082
      %1084 = vadd.xlane.f32.xlu0 %v1083
      %v1085 = vpop.xlane.xlu0 %1084
      %v1086 = vrot.slane %v1085, 4
      %v1087 = vadd.f32 %v1085, %v1086
      %v1088 = vrot.slane %v1087, 2
      %v1089 = vadd.f32 %v1087, %v1088
      %v1090 = vrot.slane %v1089, 1
      %v1091 = vadd.f32 %v1089, %v1090
      %s1092 = vtos %v1091
      %v1093 = vstv %s1064
      %vm1094 = vcmp.ge.s32.totalorder %v914, %v1093
      %vm1095 = vmand %vm901, %vm1094
      %v1096 = vsel %vm1095, 1, 0
      %v1097 = vcvt.s32.f32 %v1096
      %1098 = vadd.xlane.f32.xlu0 %v1097
      %v1099 = vpop.xlane.xlu0 %1098
      %v1100 = vrot.slane %v1099, 4
      %v1101 = vadd.f32 %v1099, %v1100
      %v1102 = vrot.slane %v1101, 2
      %v1103 = vadd.f32 %v1101, %v1102
      %v1104 = vrot.slane %v1103, 1
      %v1105 = vadd.f32 %v1103, %v1104
      %s1106 = vtos %v1105
      %p1107 = scmp.ge.f32.partialorder %s1078, %s913
      %s1108 = scalar_select %p1107, %s1062, %s1061
      %p1109 = scmp.ge.f32.partialorder %s1092, %s913
      %s1110 = scalar_select %p1109, %s1063, %s1108
      %p1111 = scmp.ge.f32.partialorder %s1106, %s913
      %s1112 = scalar_select %p1111, %s1064, %s1110
      %s1113 = sor.u32 %s1112, 1
      %s1114 = sor.u32 %s1112, 2
      %s1115 = sor.u32 %s1112, 3
      %v1116 = vstv %s1113
      %vm1117 = vcmp.ge.s32.totalorder %v914, %v1116
      %vm1118 = vmand %vm901, %vm1117
      %v1119 = vsel %vm1118, 1, 0
      %v1120 = vcvt.s32.f32 %v1119
      %1121 = vadd.xlane.f32.xlu0 %v1120
      %v1122 = vpop.xlane.xlu0 %1121
      %v1123 = vrot.slane %v1122, 4
      %v1124 = vadd.f32 %v1122, %v1123
      %v1125 = vrot.slane %v1124, 2
      %v1126 = vadd.f32 %v1124, %v1125
      %v1127 = vrot.slane %v1126, 1
      %v1128 = vadd.f32 %v1126, %v1127
      %s1129 = vtos %v1128
      %v1130 = vstv %s1114
      %vm1131 = vcmp.ge.s32.totalorder %v914, %v1130
      %vm1132 = vmand %vm901, %vm1131
      %v1133 = vsel %vm1132, 1, 0
      %v1134 = vcvt.s32.f32 %v1133
      %1135 = vadd.xlane.f32.xlu0 %v1134
      %v1136 = vpop.xlane.xlu0 %1135
      %v1137 = vrot.slane %v1136, 4
      %v1138 = vadd.f32 %v1136, %v1137
      %v1139 = vrot.slane %v1138, 2
      %v1140 = vadd.f32 %v1138, %v1139
      %v1141 = vrot.slane %v1140, 1
      %v1142 = vadd.f32 %v1140, %v1141
      %s1143 = vtos %v1142
      %v1144 = vstv %s1115
      %vm1145 = vcmp.ge.s32.totalorder %v914, %v1144
      %vm1146 = vmand %vm901, %vm1145
      %v1147 = vsel %vm1146, 1, 0
      %v1148 = vcvt.s32.f32 %v1147
      %1149 = vadd.xlane.f32.xlu0 %v1148
      %v1150 = vpop.xlane.xlu0 %1149
      %v1151 = vrot.slane %v1150, 4
      %v1152 = vadd.f32 %v1150, %v1151
      %v1153 = vrot.slane %v1152, 2
      %v1154 = vadd.f32 %v1152, %v1153
      %v1155 = vrot.slane %v1154, 1
      %v1156 = vadd.f32 %v1154, %v1155
      %s1157 = vtos %v1156
      %p1158 = scmp.ge.f32.partialorder %s1129, %s913
      %s1159 = scalar_select %p1158, %s1113, %s1112
      %p1160 = scmp.ge.f32.partialorder %s1143, %s913
      %s1161 = scalar_select %p1160, %s1114, %s1159
      %p1162 = scmp.ge.f32.partialorder %s1157, %s913
      %s1163 = scalar_select %p1162, %s1115, %s1161
      %v1164 = vstv %s1163
      %vm1165 = vcmp.ge.s32.totalorder %v914, %v1164
      %vm1166 = vmand %vm901, %vm1165
      %vm1167 = vmor %vm900, %vm1166
      %v1168 = vsel %vm1167, 1, 0
      %v1169 = vcvt.s32.f32 %v1168
      %v1170 = vld [vmem:[%s147] sm:$0xff]
      %v1171 = vadd.f32 %v1170, %v1169
      %1172 = vst [vmem:[%s155] sm:$0xff] %v1171
      %p1173 = scmp.lt.s32.totalorder %s13, 1
      %s1174 = scalar_select %p1173, %s13, 1
      %s1175 = smul.addr %s1174, 8
      %s1176 = scalar_lea.vmem %s2, %s1175
      // Predicated region
      $region29: #{topk_weight_update.1} parent=27 // pred_check
        %p1177 = pneg %p83
      $region30: #{topk_weight_update.1} parent=27 // pred_check_branch
        %1179 = sbr.rel (%p1177) target = $region32
      $region31: #{topk_weight_update.1} parent=27 // pred_region
        _
      $region32: #{topk_weight_update.1} parent=27 // pred_fallthru
        _
    $region28: #{topk_weight_update.1} parent=5 // pred_fallthru
      _
    %p1180 = scmp.le.s32.totalorder 2, %s8
    // Predicated region
    $region33: #{topk_weight_update.1} parent=5 // pred_check
      %p1181 = pneg %p1180
    $region34: #{topk_weight_update.1} parent=5 // pred_check_branch
      %1183 = sbr.rel (%p1181) target = $region36
    $region35: #{topk_weight_update.1} parent=5 // pred_region
      %s1184 = ssub.s32 %s8, 2
      // Predicated region
      $region37: #{topk_weight_update.1} parent=35 // pred_check
        %p1185 = pneg %p89
      $region38: #{topk_weight_update.1} parent=35 // pred_check_branch
        %1187 = sbr.rel (%p1185) target = $region40
      $region39: #{topk_weight_update.1} parent=35 // pred_region
        %p1188 = scmp.lt.s32.totalorder %s14, 1
        %s1189 = scalar_select %p1188, %s14, 1
        %s1190 = smul.addr %s1189, 8
        %s1191 = scalar_lea.vmem %s2, %s1190
      $region40: #{topk_weight_update.1} parent=35 // pred_fallthru
        _
    $region36: #{topk_weight_update.1} parent=5 // pred_fallthru
      _
  $region6: #{topk_weight_update.1} parent=0 // loop_footer
    %s12 = sadd.s32 1, %s8
  $region7: #{topk_weight_update.1} parent=0 // loop_footer_branch
    %7 = sbr.rel target = $region3
  $region8: #{topk_weight_update.1} parent=0 // loop_exit
    _

</llo_original>
